<compile_context>
chip_gen: v7x
topology: tpu7x:2x2x1
jax: 0.10.0
libtpu: 0.0.40
codegen_flags: <defaults>
</compile_context>

<pallas_src>
import functools

import jax
import jax.numpy as jnp
from jax.experimental import pallas as pl
from jax.experimental.pallas import tpu as pltpu


def _round_up(x, m):
    return ((x + m - 1) // m) * m


def mlp_net_kernel(batch_ref, x_ref, w1_ref, b1_ref, w2_ref, b2_ref,
                   wg_ref, bg_ref, wr1_ref, br1_ref, wr2_ref, br2_ref,
                   wr3_ref, br3_ref, out_ref, acc_ref, cnt_ref):
    i = pl.program_id(0)

    @pl.when(i == 0)
    def _init():
        acc_ref[...] = jnp.zeros_like(acc_ref)
        cnt_ref[...] = jnp.zeros_like(cnt_ref)

    cdt = x_ref.dtype  # matmul operand dtype (bf16 fast path, or f32)

    # feat_mlp layer 0: Linear + ReLU   (in_feat_dropout / dropout = identity, eval)
    h = jnp.dot(x_ref[...], w1_ref[...], preferred_element_type=jnp.float32)
    h = jnp.maximum(h + b1_ref[...], 0.0)

    # feat_mlp layer 1: Linear + ReLU
    h = jnp.dot(h.astype(cdt), w2_ref[...], preferred_element_type=jnp.float32)
    h = jnp.maximum(h + b2_ref[...], 0.0)

    # gated: sigmoid(gates(h)) * h      (sigmoid -> EUP, no VALU divide)
    g = jnp.dot(h.astype(cdt), wg_ref[...], preferred_element_type=jnp.float32)
    h = jax.nn.sigmoid(g + bg_ref[...]) * h

    # mean readout: per-tile segment-sum via in-kernel one-hot assignment
    # (no dense [num_graphs, N] pool matrix in HBM; padded nodes carry an
    #  out-of-range graph id so they match no row of the iota).
    gids = jax.lax.broadcasted_iota(
        jnp.int32, (acc_ref.shape[0], batch_ref.shape[1]), 0)
    onehot = (gids == batch_ref[...]).astype(jnp.float32)       # (G_PAD, TILE_N)
    cnt_ref[...] += onehot.sum(axis=1, keepdims=True)
    acc_ref[...] += jnp.dot(onehot.astype(cdt), h.astype(cdt),
                            preferred_element_type=jnp.float32)

    @pl.when(i == pl.num_programs(0) - 1)
    def _finalize():
        hg = acc_ref[...] / jnp.maximum(cnt_ref[...], 1.0)      # mean pool
        # MLPReadout: two ReLU'd halving layers + final linear
        y = jnp.dot(hg.astype(cdt), wr1_ref[...], preferred_element_type=jnp.float32)
        y = jnp.maximum(y + br1_ref[...], 0.0)
        y = jnp.dot(y.astype(cdt), wr2_ref[...], preferred_element_type=jnp.float32)
        y = jnp.maximum(y + br2_ref[...], 0.0)
        y = jnp.dot(y.astype(cdt), wr3_ref[...], preferred_element_type=jnp.float32)
        out_ref[...] = (y + br3_ref[...]).astype(out_ref.dtype)


def mlp_net_forward(feature, batch, num_graphs, params, *,
                    tile_n=256, compute_dtype=jnp.bfloat16):
    """feature: [N, in_dim] f32, batch: [N] int32 graph ids in [0, num_graphs)."""
    assert tile_n % 128 == 0, "tile_n must be a multiple of 128 (lane width)"
    n_nodes, in_dim = feature.shape
    hidden = params["w1"].shape[1]
    h2 = params["wr1"].shape[1]
    h4 = params["wr2"].shape[1]
    n_classes = params["wr3"].shape[1]

    # Lane/sublane-dense padded dims.
    IN_P = _round_up(in_dim, 128)
    H_P = _round_up(hidden, 128)
    H2_P = _round_up(h2, 128)
    H4_P = _round_up(h4, 128)
    C_P = _round_up(n_classes, 128)
    G_P = _round_up(num_graphs, 8)
    N_P = _round_up(n_nodes, tile_n)
    num_tiles = N_P // tile_n

    x = jnp.pad(feature, ((0, N_P - n_nodes), (0, IN_P - in_dim))).astype(compute_dtype)
    # Padded nodes get an out-of-range graph id -> contribute to no graph.
    batch_p = jnp.pad(batch.astype(jnp.int32), (0, N_P - n_nodes),
                      constant_values=G_P).reshape(1, N_P)

    def pw(w, r, c):
        return jnp.pad(w, ((0, r - w.shape[0]), (0, c - w.shape[1]))).astype(compute_dtype)

    def pb(b, c):
        return jnp.pad(b, ((0, 0), (0, c - b.shape[1]))).astype(jnp.float32)

    w1, b1 = pw(params["w1"], IN_P, H_P), pb(params["b1"], H_P)
    w2, b2 = pw(params["w2"], H_P, H_P), pb(params["b2"], H_P)
    wg, bg = pw(params["wg"], H_P, H_P), pb(params["bg"], H_P)
    wr1, br1 = pw(params["wr1"], H_P, H2_P), pb(params["br1"], H2_P)
    wr2, br2 = pw(params["wr2"], H2_P, H4_P), pb(params["br2"], H4_P)
    wr3, br3 = pw(params["wr3"], H4_P, C_P), pb(params["br3"], C_P)
    resident = (w1, b1, w2, b2, wg, bg, wr1, br1, wr2, br2, wr3, br3)

    def full_spec(a):
        return pl.BlockSpec(a.shape, lambda i, _nd=a.ndim: (0,) * _nd)

    in_specs = ([pl.BlockSpec((1, tile_n), lambda i: (0, i)),       # graph ids (streamed)
                 pl.BlockSpec((tile_n, IN_P), lambda i: (i, 0))]    # node features (streamed)
                + [full_spec(a) for a in resident])                 # resident weights/biases
    out_spec = pl.BlockSpec((G_P, C_P), lambda i: (0, 0))           # accumulator-style output

    # Explicit VMEM budget: double-buffered streamed tiles + resident weights
    # + accumulator scratch + headroom for the (tile_n, H_P) f32 intermediates.
    itemsize = jnp.dtype(compute_dtype).itemsize
    stream_bytes = 2 * (tile_n * IN_P * itemsize + tile_n * 4)
    weight_bytes = sum(int(a.size) * int(a.dtype.itemsize) for a in resident)
    scratch_bytes = (G_P * H_P + G_P + G_P * C_P) * 4
    interm_bytes = 4 * tile_n * H_P * 4
    vmem_limit = int(min(64 * 1024 * 1024,
                         max(16 * 1024 * 1024,
                             2 * (stream_bytes + weight_bytes + scratch_bytes)
                             + interm_bytes)))

    out = pl.pallas_call(
        mlp_net_kernel,
        out_shape=jax.ShapeDtypeStruct((G_P, C_P), jnp.float32),
        grid=(num_tiles,),
        in_specs=in_specs,
        out_specs=out_spec,
        scratch_shapes=[pltpu.VMEM((G_P, H_P), jnp.float32),   # pooled segment-sum
                        pltpu.VMEM((G_P, 1), jnp.float32)],    # per-graph node counts
        compiler_params=pltpu.CompilerParams(
            dimension_semantics=("arbitrary",),                # node axis is a reduction
            vmem_limit_bytes=vmem_limit),
    )(batch_p, x, *resident)

    return out[:num_graphs, :n_classes]


def init_params(key, in_dim, hidden_dim, n_classes):
    ks = jax.random.split(key, 12)

    def lin(kw, kb, fan_in, fan_out):
        bound = 1.0 / jnp.sqrt(fan_in)
        w = jax.random.uniform(kw, (fan_in, fan_out), jnp.float32, -bound, bound)
        b = jax.random.uniform(kb, (1, fan_out), jnp.float32, -bound, bound)
        return w, b

    p = {}
    p["w1"], p["b1"] = lin(ks[0], ks[1], in_dim, hidden_dim)
    p["w2"], p["b2"] = lin(ks[2], ks[3], hidden_dim, hidden_dim)
    p["wg"], p["bg"] = lin(ks[4], ks[5], hidden_dim, hidden_dim)
    p["wr1"], p["br1"] = lin(ks[6], ks[7], hidden_dim, hidden_dim // 2)
    p["wr2"], p["br2"] = lin(ks[8], ks[9], hidden_dim // 2, hidden_dim // 4)
    p["wr3"], p["br3"] = lin(ks[10], ks[11], hidden_dim // 4, n_classes)
    return p


def reference_forward(feature, batch, num_graphs, params):
    h = jnp.maximum(feature @ params["w1"] + params["b1"], 0.0)
    h = jnp.maximum(h @ params["w2"] + params["b2"], 0.0)
    h = jax.nn.sigmoid(h @ params["wg"] + params["bg"]) * h
    onehot = (batch[None, :] == jnp.arange(num_graphs)[:, None]).astype(jnp.float32)
    hg = (onehot @ h) / jnp.maximum(onehot.sum(axis=1, keepdims=True), 1.0)
    y = jnp.maximum(hg @ params["wr1"] + params["br1"], 0.0)
    y = jnp.maximum(y @ params["wr2"] + params["br2"], 0.0)
    return y @ params["wr3"] + params["br3"]


if __name__ == "__main__":
    in_dim, hidden_dim, n_classes = 16, 32, 6
    n_nodes, num_graphs = 300, 8          # 3 node tiles at tile_n=128

    key = jax.random.PRNGKey(0)
    k_feat, k_batch, k_param = jax.random.split(key, 3)

    feature = jax.random.normal(k_feat, (n_nodes, in_dim), jnp.float32)
    batch = jax.random.randint(k_batch, (n_nodes,), 0, num_graphs, dtype=jnp.int32)
    # edge_index is unused by MLPNet.forward (graph-structure-agnostic baseline).
    params = init_params(k_param, in_dim, hidden_dim, n_classes)

    ref = reference_forward(feature, batch, num_graphs, params)

    # f32 matmul path: tight correctness check of the tiled/accumulated structure.
    out_f32 = mlp_net_forward(feature, batch, num_graphs, params,
                              tile_n=128, compute_dtype=jnp.float32)
    out_f32 = jax.block_until_ready(out_f32)
    assert out_f32.shape == (num_graphs, n_classes)
    assert jnp.allclose(out_f32, ref, atol=1e-4, rtol=1e-4)

    # bf16 MXU fast path: loose tolerance (bf16 quantization of matmul operands).
    out_bf16 = mlp_net_forward(feature, batch, num_graphs, params,
                               tile_n=128, compute_dtype=jnp.bfloat16)
    out_bf16 = jax.block_until_ready(out_bf16)
    assert out_bf16.shape == (num_graphs, n_classes)
    assert jnp.allclose(out_bf16, ref, atol=3e-2, rtol=3e-2)

    print("KERNEL_OK")
</pallas_src>

<mosaic_0001>
module attributes {stable_mosaic.version = 11 : i64} {
  func.func @mlp_net_kernel(%arg0: i32, %arg1: memref<1x128xi32, #tpu.memory_space<vmem>>, %arg2: memref<128x128xf32, #tpu.memory_space<vmem>>, %arg3: memref<128x128xf32, #tpu.memory_space<vmem>>, %arg4: memref<1x128xf32, #tpu.memory_space<vmem>>, %arg5: memref<128x128xf32, #tpu.memory_space<vmem>>, %arg6: memref<1x128xf32, #tpu.memory_space<vmem>>, %arg7: memref<128x128xf32, #tpu.memory_space<vmem>>, %arg8: memref<1x128xf32, #tpu.memory_space<vmem>>, %arg9: memref<128x128xf32, #tpu.memory_space<vmem>>, %arg10: memref<1x128xf32, #tpu.memory_space<vmem>>, %arg11: memref<128x128xf32, #tpu.memory_space<vmem>>, %arg12: memref<1x128xf32, #tpu.memory_space<vmem>>, %arg13: memref<128x128xf32, #tpu.memory_space<vmem>>, %arg14: memref<1x128xf32, #tpu.memory_space<vmem>>, %arg15: memref<8x128xf32, #tpu.memory_space<vmem>>, %arg16: memref<8x128xf32, #tpu.memory_space<vmem>>, %arg17: memref<8x1xf32, #tpu.memory_space<vmem>>) attributes {dimension_semantics = [#tpu.dimension_semantics<arbitrary>], iteration_bounds = array<i64: 3>, scalar_prefetch = 0 : i64, scratch_operands = 2 : i64, tpu.core_type = #tpu.core_type<tc>, window_params = [{transform_indices = @transform_0, window_bounds = array<i64: 1, 128>}, {transform_indices = @transform_1, window_bounds = array<i64: 128, 128>}, {pipeline_mode = #tpu.pipeline_mode<synchronous>, transform_indices = @transform_2, window_bounds = array<i64: 128, 128>}, {pipeline_mode = #tpu.pipeline_mode<synchronous>, transform_indices = @transform_3, window_bounds = array<i64: 1, 128>}, {pipeline_mode = #tpu.pipeline_mode<synchronous>, transform_indices = @transform_4, window_bounds = array<i64: 128, 128>}, {pipeline_mode = #tpu.pipeline_mode<synchronous>, transform_indices = @transform_5, window_bounds = array<i64: 1, 128>}, {pipeline_mode = #tpu.pipeline_mode<synchronous>, transform_indices = @transform_6, window_bounds = array<i64: 128, 128>}, {pipeline_mode = #tpu.pipeline_mode<synchronous>, transform_indices = @transform_7, window_bounds = array<i64: 1, 128>}, {pipeline_mode = #tpu.pipeline_mode<synchronous>, transform_indices = @transform_8, window_bounds = array<i64: 128, 128>}, {pipeline_mode = #tpu.pipeline_mode<synchronous>, transform_indices = @transform_9, window_bounds = array<i64: 1, 128>}, {pipeline_mode = #tpu.pipeline_mode<synchronous>, transform_indices = @transform_10, window_bounds = array<i64: 128, 128>}, {pipeline_mode = #tpu.pipeline_mode<synchronous>, transform_indices = @transform_11, window_bounds = array<i64: 1, 128>}, {pipeline_mode = #tpu.pipeline_mode<synchronous>, transform_indices = @transform_12, window_bounds = array<i64: 128, 128>}, {pipeline_mode = #tpu.pipeline_mode<synchronous>, transform_indices = @transform_13, window_bounds = array<i64: 1, 128>}, {pipeline_mode = #tpu.pipeline_mode<synchronous>, transform_indices = @transform_14, window_bounds = array<i64: 8, 128>}]} {
    %c0_i32 = arith.constant 0 : i32
    %0 = arith.cmpi eq, %arg0, %c0_i32 : i32
    %1 = arith.extui %0 : i1 to i32
    %c0_i32_0 = arith.constant 0 : i32
    %2 = arith.cmpi ne, %1, %c0_i32_0 : i32
    scf.if %2 {
      %cst_32 = arith.constant 0.000000e+00 : f32
      %47 = vector.broadcast %cst_32 : f32 to vector<8x128xf32>
      %c0_33 = arith.constant 0 : index
      %c0_34 = arith.constant 0 : index
      %48 = vector.load %arg16[%c0_33, %c0_34] : memref<8x128xf32, #tpu.memory_space<vmem>>, vector<8x128xf32>
      tpu.vector_store %arg16[%c0_33, %c0_34], %47 {strides = array<i32>} : memref<8x128xf32, #tpu.memory_space<vmem>>, vector<8x128xf32>,
      %cst_35 = arith.constant 0.000000e+00 : f32
      %49 = vector.broadcast %cst_35 : f32 to vector<8x1xf32>
      %c0_36 = arith.constant 0 : index
      %c0_37 = arith.constant 0 : index
      %50 = vector.load %arg17[%c0_36, %c0_37] : memref<8x1xf32, #tpu.memory_space<vmem>>, vector<8x1xf32>
      tpu.vector_store %arg17[%c0_36, %c0_37], %49 {strides = array<i32>} : memref<8x1xf32, #tpu.memory_space<vmem>>, vector<8x1xf32>,
    } else {
    }
    %c0 = arith.constant 0 : index
    %c0_1 = arith.constant 0 : index
    %3 = vector.load %arg2[%c0, %c0_1] : memref<128x128xf32, #tpu.memory_space<vmem>>, vector<128x128xf32>
    %c0_2 = arith.constant 0 : index
    %c0_3 = arith.constant 0 : index
    %4 = vector.load %arg3[%c0_2, %c0_3] : memref<128x128xf32, #tpu.memory_space<vmem>>, vector<128x128xf32>
    %cst = arith.constant dense<0.000000e+00> : vector<128x128xf32>
    %5 = tpu.matmul %3, %4, %cst {dimension_numbers = #tpu.dot_dimension_numbers<[1], [0], [0], [1], [0, 0, 1, 1], [], []>} : vector<128x128xf32>, vector<128x128xf32>, vector<128x128xf32> -> vector<128x128xf32>
    %c0_4 = arith.constant 0 : index
    %c0_5 = arith.constant 0 : index
    %6 = vector.load %arg4[%c0_4, %c0_5] : memref<1x128xf32, #tpu.memory_space<vmem>>, vector<1x128xf32>
    %7 = vector.broadcast %6 : vector<1x128xf32> to vector<128x128xf32>
    %8 = arith.addf %5, %7 : vector<128x128xf32>
    %cst_6 = arith.constant 0.000000e+00 : f32
    %9 = vector.broadcast %cst_6 : f32 to vector<128x128xf32>
    %10 = arith.maximumf %8, %9 : vector<128x128xf32>
    %c0_7 = arith.constant 0 : index
    %c0_8 = arith.constant 0 : index
    %11 = vector.load %arg5[%c0_7, %c0_8] : memref<128x128xf32, #tpu.memory_space<vmem>>, vector<128x128xf32>
    %cst_9 = arith.constant dense<0.000000e+00> : vector<128x128xf32>
    %12 = tpu.matmul %10, %11, %cst_9 {dimension_numbers = #tpu.dot_dimension_numbers<[1], [0], [0], [1], [0, 0, 1, 1], [], []>} : vector<128x128xf32>, vector<128x128xf32>, vector<128x128xf32> -> vector<128x128xf32>
    %c0_10 = arith.constant 0 : index
    %c0_11 = arith.constant 0 : index
    %13 = vector.load %arg6[%c0_10, %c0_11] : memref<1x128xf32, #tpu.memory_space<vmem>>, vector<1x128xf32>
    %14 = vector.broadcast %13 : vector<1x128xf32> to vector<128x128xf32>
    %15 = arith.addf %12, %14 : vector<128x128xf32>
    %cst_12 = arith.constant 0.000000e+00 : f32
    %16 = vector.broadcast %cst_12 : f32 to vector<128x128xf32>
    %17 = arith.maximumf %15, %16 : vector<128x128xf32>
    %c0_13 = arith.constant 0 : index
    %c0_14 = arith.constant 0 : index
    %18 = vector.load %arg7[%c0_13, %c0_14] : memref<128x128xf32, #tpu.memory_space<vmem>>, vector<128x128xf32>
    %cst_15 = arith.constant dense<0.000000e+00> : vector<128x128xf32>
    %19 = tpu.matmul %17, %18, %cst_15 {dimension_numbers = #tpu.dot_dimension_numbers<[1], [0], [0], [1], [0, 0, 1, 1], [], []>} : vector<128x128xf32>, vector<128x128xf32>, vector<128x128xf32> -> vector<128x128xf32>
    %c0_16 = arith.constant 0 : index
    %c0_17 = arith.constant 0 : index
    %20 = vector.load %arg8[%c0_16, %c0_17] : memref<1x128xf32, #tpu.memory_space<vmem>>, vector<1x128xf32>
    %21 = vector.broadcast %20 : vector<1x128xf32> to vector<128x128xf32>
    %22 = arith.addf %19, %21 : vector<128x128xf32>
    %23 = arith.negf %22 : vector<128x128xf32>
    %24 = math.exp %23 : vector<128x128xf32>
    %cst_18 = arith.constant 1.000000e+00 : f32
    %25 = vector.broadcast %cst_18 : f32 to vector<128x128xf32>
    %26 = arith.addf %25, %24 : vector<128x128xf32>
    %27 = arith.divf %25, %26 : vector<128x128xf32>
    %28 = arith.mulf %27, %17 : vector<128x128xf32>
    %29 = tpu.iota {dimensions = array<i32: 0>} : vector<8x128xi32>
    %c0_19 = arith.constant 0 : index
    %c0_20 = arith.constant 0 : index
    %30 = vector.load %arg1[%c0_19, %c0_20] : memref<1x128xi32, #tpu.memory_space<vmem>>, vector<1x128xi32>
    %31 = vector.broadcast %30 : vector<1x128xi32> to vector<8x128xi32>
    %32 = arith.cmpi eq, %29, %31 : vector<8x128xi32>
    %33 = arith.extui %32 : vector<8x128xi1> to vector<8x128xi32>
    %34 = arith.sitofp %33 : vector<8x128xi32> to vector<8x128xf32>
    %c0_21 = arith.constant 0 : index
    %c0_22 = arith.constant 0 : index
    %35 = vector.load %arg17[%c0_21, %c0_22] : memref<8x1xf32, #tpu.memory_space<vmem>>, vector<8x1xf32>
    %cst_23 = arith.constant dense<0.000000e+00> : vector<8xf32>
    %36 = vector.multi_reduction <add>, %34, %cst_23 [1] : vector<8x128xf32> to vector<8xf32>
    %37 = vector.shape_cast %36 : vector<8xf32> to vector<8x1xf32>
    %38 = arith.addf %35, %37 : vector<8x1xf32>
    %c0_24 = arith.constant 0 : index
    %c0_25 = arith.constant 0 : index
    %39 = vector.load %arg17[%c0_24, %c0_25] : memref<8x1xf32, #tpu.memory_space<vmem>>, vector<8x1xf32>
    tpu.vector_store %arg17[%c0_24, %c0_25], %38 {strides = array<i32>} : memref<8x1xf32, #tpu.memory_space<vmem>>, vector<8x1xf32>,
    %c0_26 = arith.constant 0 : index
    %c0_27 = arith.constant 0 : index
    %40 = vector.load %arg16[%c0_26, %c0_27] : memref<8x128xf32, #tpu.memory_space<vmem>>, vector<8x128xf32>
    %cst_28 = arith.constant dense<0.000000e+00> : vector<8x128xf32>
    %41 = tpu.matmul %34, %28, %cst_28 {dimension_numbers = #tpu.dot_dimension_numbers<[1], [0], [0], [1], [0, 0, 1, 1], [], []>} : vector<8x128xf32>, vector<128x128xf32>, vector<8x128xf32> -> vector<8x128xf32>
    %42 = arith.addf %40, %41 : vector<8x128xf32>
    %c0_29 = arith.constant 0 : index
    %c0_30 = arith.constant 0 : index
    %43 = vector.load %arg16[%c0_29, %c0_30] : memref<8x128xf32, #tpu.memory_space<vmem>>, vector<8x128xf32>
    tpu.vector_store %arg16[%c0_29, %c0_30], %42 {strides = array<i32>} : memref<8x128xf32, #tpu.memory_space<vmem>>, vector<8x128xf32>,
    %c2_i32 = arith.constant 2 : i32
    %44 = arith.cmpi eq, %arg0, %c2_i32 : i32
    %45 = arith.extui %44 : i1 to i32
    %c0_i32_31 = arith.constant 0 : i32
    %46 = arith.cmpi ne, %45, %c0_i32_31 : i32
    scf.if %46 {
      %c0_32 = arith.constant 0 : index
      %c0_33 = arith.constant 0 : index
      %47 = vector.load %arg16[%c0_32, %c0_33] : memref<8x128xf32, #tpu.memory_space<vmem>>, vector<8x128xf32>
      %c0_34 = arith.constant 0 : index
      %c0_35 = arith.constant 0 : index
      %48 = vector.load %arg17[%c0_34, %c0_35] : memref<8x1xf32, #tpu.memory_space<vmem>>, vector<8x1xf32>
      %cst_36 = arith.constant 1.000000e+00 : f32
      %49 = vector.broadcast %cst_36 : f32 to vector<8x1xf32>
      %50 = arith.maximumf %48, %49 : vector<8x1xf32>
      %51 = vector.broadcast %50 : vector<8x1xf32> to vector<8x128xf32>
      %52 = arith.divf %47, %51 : vector<8x128xf32>
      %c0_37 = arith.constant 0 : index
      %c0_38 = arith.constant 0 : index
      %53 = vector.load %arg9[%c0_37, %c0_38] : memref<128x128xf32, #tpu.memory_space<vmem>>, vector<128x128xf32>
      %cst_39 = arith.constant dense<0.000000e+00> : vector<8x128xf32>
      %54 = tpu.matmul %52, %53, %cst_39 {dimension_numbers = #tpu.dot_dimension_numbers<[1], [0], [0], [1], [0, 0, 1, 1], [], []>} : vector<8x128xf32>, vector<128x128xf32>, vector<8x128xf32> -> vector<8x128xf32>
      %c0_40 = arith.constant 0 : index
      %c0_41 = arith.constant 0 : index
      %55 = vector.load %arg10[%c0_40, %c0_41] : memref<1x128xf32, #tpu.memory_space<vmem>>, vector<1x128xf32>
      %56 = vector.broadcast %55 : vector<1x128xf32> to vector<8x128xf32>
      %57 = arith.addf %54, %56 : vector<8x128xf32>
      %cst_42 = arith.constant 0.000000e+00 : f32
      %58 = vector.broadcast %cst_42 : f32 to vector<8x128xf32>
      %59 = arith.maximumf %57, %58 : vector<8x128xf32>
      %c0_43 = arith.constant 0 : index
      %c0_44 = arith.constant 0 : index
      %60 = vector.load %arg11[%c0_43, %c0_44] : memref<128x128xf32, #tpu.memory_space<vmem>>, vector<128x128xf32>
      %cst_45 = arith.constant dense<0.000000e+00> : vector<8x128xf32>
      %61 = tpu.matmul %59, %60, %cst_45 {dimension_numbers = #tpu.dot_dimension_numbers<[1], [0], [0], [1], [0, 0, 1, 1], [], []>} : vector<8x128xf32>, vector<128x128xf32>, vector<8x128xf32> -> vector<8x128xf32>
      %c0_46 = arith.constant 0 : index
      %c0_47 = arith.constant 0 : index
      %62 = vector.load %arg12[%c0_46, %c0_47] : memref<1x128xf32, #tpu.memory_space<vmem>>, vector<1x128xf32>
      %63 = vector.broadcast %62 : vector<1x128xf32> to vector<8x128xf32>
      %64 = arith.addf %61, %63 : vector<8x128xf32>
      %cst_48 = arith.constant 0.000000e+00 : f32
      %65 = vector.broadcast %cst_48 : f32 to vector<8x128xf32>
      %66 = arith.maximumf %64, %65 : vector<8x128xf32>
      %c0_49 = arith.constant 0 : index
      %c0_50 = arith.constant 0 : index
      %67 = vector.load %arg13[%c0_49, %c0_50] : memref<128x128xf32, #tpu.memory_space<vmem>>, vector<128x128xf32>
      %cst_51 = arith.constant dense<0.000000e+00> : vector<8x128xf32>
      %68 = tpu.matmul %66, %67, %cst_51 {dimension_numbers = #tpu.dot_dimension_numbers<[1], [0], [0], [1], [0, 0, 1, 1], [], []>} : vector<8x128xf32>, vector<128x128xf32>, vector<8x128xf32> -> vector<8x128xf32>
      %c0_52 = arith.constant 0 : index
      %c0_53 = arith.constant 0 : index
      %69 = vector.load %arg14[%c0_52, %c0_53] : memref<1x128xf32, #tpu.memory_space<vmem>>, vector<1x128xf32>
      %70 = vector.broadcast %69 : vector<1x128xf32> to vector<8x128xf32>
      %71 = arith.addf %68, %70 : vector<8x128xf32>
      %c0_54 = arith.constant 0 : index
      %c0_55 = arith.constant 0 : index
      %72 = vector.load %arg15[%c0_54, %c0_55] : memref<8x128xf32, #tpu.memory_space<vmem>>, vector<8x128xf32>
      tpu.vector_store %arg15[%c0_54, %c0_55], %71 {strides = array<i32>} : memref<8x128xf32, #tpu.memory_space<vmem>>, vector<8x128xf32>,
    } else {
    }
    return
  }
  func.func @transform_0(%arg0: i32) -> (i32, i32) {
    %c0_i32 = arith.constant 0 : i32
    %c0_i32_0 = arith.constant 0 : i32
    return %c0_i32, %arg0 : i32, i32
  }
  func.func @transform_1(%arg0: i32) -> (i32, i32) {
    %c0_i32 = arith.constant 0 : i32
    %c0_i32_0 = arith.constant 0 : i32
    return %arg0, %c0_i32 : i32, i32
  }
  func.func @transform_2(%arg0: i32) -> (i32, i32) {
    %c0_i32 = arith.constant 0 : i32
    %c0_i32_0 = arith.constant 0 : i32
    %c0_i32_1 = arith.constant 0 : i32
    return %c0_i32, %c0_i32_0 : i32, i32
  }
  func.func @transform_3(%arg0: i32) -> (i32, i32) {
    %c0_i32 = arith.constant 0 : i32
    %c0_i32_0 = arith.constant 0 : i32
    %c0_i32_1 = arith.constant 0 : i32
    return %c0_i32, %c0_i32_0 : i32, i32
  }
  func.func @transform_4(%arg0: i32) -> (i32, i32) {
    %c0_i32 = arith.constant 0 : i32
    %c0_i32_0 = arith.constant 0 : i32
    %c0_i32_1 = arith.constant 0 : i32
    return %c0_i32, %c0_i32_0 : i32, i32
  }
  func.func @transform_5(%arg0: i32) -> (i32, i32) {
    %c0_i32 = arith.constant 0 : i32
    %c0_i32_0 = arith.constant 0 : i32
    %c0_i32_1 = arith.constant 0 : i32
    return %c0_i32, %c0_i32_0 : i32, i32
  }
  func.func @transform_6(%arg0: i32) -> (i32, i32) {
    %c0_i32 = arith.constant 0 : i32
    %c0_i32_0 = arith.constant 0 : i32
    %c0_i32_1 = arith.constant 0 : i32
    return %c0_i32, %c0_i32_0 : i32, i32
  }
  func.func @transform_7(%arg0: i32) -> (i32, i32) {
    %c0_i32 = arith.constant 0 : i32
    %c0_i32_0 = arith.constant 0 : i32
    %c0_i32_1 = arith.constant 0 : i32
    return %c0_i32, %c0_i32_0 : i32, i32
  }
  func.func @transform_8(%arg0: i32) -> (i32, i32) {
    %c0_i32 = arith.constant 0 : i32
    %c0_i32_0 = arith.constant 0 : i32
    %c0_i32_1 = arith.constant 0 : i32
    return %c0_i32, %c0_i32_0 : i32, i32
  }
  func.func @transform_9(%arg0: i32) -> (i32, i32) {
    %c0_i32 = arith.constant 0 : i32
    %c0_i32_0 = arith.constant 0 : i32
    %c0_i32_1 = arith.constant 0 : i32
    return %c0_i32, %c0_i32_0 : i32, i32
  }
  func.func @transform_10(%arg0: i32) -> (i32, i32) {
    %c0_i32 = arith.constant 0 : i32
    %c0_i32_0 = arith.constant 0 : i32
    %c0_i32_1 = arith.constant 0 : i32
    return %c0_i32, %c0_i32_0 : i32, i32
  }
  func.func @transform_11(%arg0: i32) -> (i32, i32) {
    %c0_i32 = arith.constant 0 : i32
    %c0_i32_0 = arith.constant 0 : i32
    %c0_i32_1 = arith.constant 0 : i32
    return %c0_i32, %c0_i32_0 : i32, i32
  }
  func.func @transform_12(%arg0: i32) -> (i32, i32) {
    %c0_i32 = arith.constant 0 : i32
    %c0_i32_0 = arith.constant 0 : i32
    %c0_i32_1 = arith.constant 0 : i32
    return %c0_i32, %c0_i32_0 : i32, i32
  }
  func.func @transform_13(%arg0: i32) -> (i32, i32) {
    %c0_i32 = arith.constant 0 : i32
    %c0_i32_0 = arith.constant 0 : i32
    %c0_i32_1 = arith.constant 0 : i32
    return %c0_i32, %c0_i32_0 : i32, i32
  }
  func.func @transform_14(%arg0: i32) -> (i32, i32) {
    %c0_i32 = arith.constant 0 : i32
    %c0_i32_0 = arith.constant 0 : i32
    %c0_i32_1 = arith.constant 0 : i32
    return %c0_i32, %c0_i32_0 : i32, i32
  }
}

</mosaic_0001>

<llo_original>
// kernel: tpu_custom_call.1
$region0: #{tpu_custom_call.1}
  #allocation0 [shape = 'u32[]', space=smem, size = 0x4, offset = 0x4, fixed_abs, tag = 'smem constant byte address 0x4 - core index']
  #allocation1 [shape = 'u32[144,128]{1,0:T(1,128)}', space=vmem, size = 0x12000, scoped, tag = 'internal scratch']
  #allocation2 [shape = 'f32[8,128]{1,0:T(8,128)}', space=vmem, size = 0x1000, scoped, tag = 'scratch operand']
  #allocation3 [shape = 'f32[8,1]{1,0:T(8,128)}', space=vmem, size = 0x1000, scoped, tag = 'scratch operand']
  %s0 = inlined_call_operand.hbm [shape: s32[1,384], index: 0, kind: input, shape index: {}]
  %s1 = inlined_call_operand.hbm [shape: f32[384,128], index: 1, kind: input, shape index: {}]
  %s2 = inlined_call_operand.hbm [shape: f32[128,128], index: 2, kind: input, shape index: {}]
  %s3 = inlined_call_operand.vmem [shape: f32[1,128], index: 3, kind: input, shape index: {}]
  %s4 = inlined_call_operand.hbm [shape: f32[128,128], index: 4, kind: input, shape index: {}]
  %s5 = inlined_call_operand.vmem [shape: f32[1,128], index: 5, kind: input, shape index: {}]
  %s6 = inlined_call_operand.hbm [shape: f32[128,128], index: 6, kind: input, shape index: {}]
  %s7 = inlined_call_operand.vmem [shape: f32[1,128], index: 7, kind: input, shape index: {}]
  %s8 = inlined_call_operand.hbm [shape: f32[128,128], index: 8, kind: input, shape index: {}]
  %s9 = inlined_call_operand.vmem [shape: f32[1,128], index: 9, kind: input, shape index: {}]
  %s10 = inlined_call_operand.hbm [shape: f32[128,128], index: 10, kind: input, shape index: {}]
  %s11 = inlined_call_operand.vmem [shape: f32[1,128], index: 11, kind: input, shape index: {}]
  %s12 = inlined_call_operand.hbm [shape: f32[128,128], index: 12, kind: input, shape index: {}]
  %s13 = inlined_call_operand.vmem [shape: f32[1,128], index: 13, kind: input, shape index: {}]
  %s14 = inlined_call_operand.hbm [shape: f32[8,128], index: 14, kind: output, shape index: {}]
  %s15 = sld [smem:[#allocation0]]
  $region129: #{tpu_custom_call.1} parent=0
    _
  %s17 = ssub.s32 1, %s15
  %s18 = scalar_select 0, %s17, %s15
  $region1: #{tpu_custom_call.1} parent=0
    #allocation4 [shape = 'u8[1024]{0}', space=vmem, size = 0x400, scoped, tag = 'input window, operand 0']
    #allocation5 [shape = 's32[2]{0}', space=sflag, size = 0x8, scoped, tag = 'scoped memory for tpu_custom_call.1']
    #allocation6 [shape = 's32[2]{0}', space=sflag, size = 0x8, scoped, tag = 'scoped memory for tpu_custom_call.1']
    #allocation7 [shape = 'u8[131072]{0}', space=vmem, size = 0x20000, scoped, tag = 'input window, operand 1']
    #allocation8 [shape = 's32[2]{0}', space=sflag, size = 0x8, scoped, tag = 'scoped memory for tpu_custom_call.1']
    #allocation9 [shape = 'u8[65536]{0}', space=vmem, size = 0x10000, scoped, tag = 'input window, operand 2, single buffered']
    #allocation10 [shape = 'u8[65536]{0}', space=vmem, size = 0x10000, scoped, tag = 'input window, operand 4, single buffered']
    #allocation11 [shape = 's32[1]{0}', space=sflag, size = 0x4, scoped, tag = 'scoped memory for tpu_custom_call.1']
    #allocation12 [shape = 'u8[65536]{0}', space=vmem, size = 0x10000, scoped, tag = 'input window, operand 6, single buffered']
    #allocation13 [shape = 'u8[65536]{0}', space=vmem, size = 0x10000, scoped, tag = 'input window, operand 8, single buffered']
    #allocation14 [shape = 's32[1]{0}', space=sflag, size = 0x4, scoped, tag = 'scoped memory for tpu_custom_call.1']
    #allocation15 [shape = 'u8[65536]{0}', space=vmem, size = 0x10000, scoped, tag = 'input window, operand 10, single buffered']
    #allocation16 [shape = 'u8[65536]{0}', space=vmem, size = 0x10000, scoped, tag = 'input window, operand 12, single buffered']
    #allocation17 [shape = 's32[1]{0}', space=sflag, size = 0x4, scoped, tag = 'scoped memory for tpu_custom_call.1']
    #allocation18 [shape = 'u8[4096]{0}', space=vmem, size = 0x1000, scoped, tag = 'output window, operand 0, single buffered']
    %19 = vsyncpa [#allocation5], 0
    %s20 = scalar_lea.sflag [#allocation5], 1
    %21 = vsyncpa %s20, 0
    %22 = vsyncpa [#allocation8], 0
    %s23 = scalar_lea.sflag [#allocation8], 1
    %24 = vsyncpa %s23, 0
    %25 = vsyncpa [#allocation11], 0
    %26 = vsyncpa [#allocation14], 0
    %27 = vsyncpa [#allocation17], 0
    %28 = vsyncpa [#allocation6], 0
    loop: start=0, step=1, limit=5
    $region2: #{tpu_custom_call.1} parent=1 // loop_pre_header
      _
    $region3: #{tpu_custom_call.1} parent=1 // loop_header
      %s30 = sphi 0, %s34
      %p31 = scmp.ge.s32.totalorder %s30, 5
      %s40 = sphi 0, %s42
      %s43 = sphi 0, %s40
      %s44 = sphi 0, %s43
      %s60 = sphi 0, %s44
      %s66 = sphi 0, %s68
      %s69 = sphi 0, %s66
      %s70 = sphi 0, %s69
      %s86 = sphi 0, %s70
      %s90 = sphi 0, %s90
      %s92 = sphi 0, %s90
      %s93 = sphi 0, %s92
      %s107 = sphi 0, %s93
      %s111 = sphi 0, %s111
      %s113 = sphi 0, %s111
      %s114 = sphi 0, %s113
      %s128 = sphi 0, %s114
      %s132 = sphi 0, %s132
      %s134 = sphi 0, %s132
      %s135 = sphi 0, %s134
      %s149 = sphi 0, %s135
      %s153 = sphi 0, %s153
      %s155 = sphi 0, %s153
      %s156 = sphi 0, %s155
      %s170 = sphi 0, %s156
      %s174 = sphi 0, %s174
      %s176 = sphi 0, %s174
      %s177 = sphi 0, %s176
      %s191 = sphi 0, %s177
      %s195 = sphi 0, %s195
      %s197 = sphi 0, %s195
      %s198 = sphi 0, %s197
      %s212 = sphi 0, %s198
      %s216 = sphi 0, %s216
      %s218 = sphi 0, %s216
      %s219 = sphi 0, %s218
      %s233 = sphi 0, %s219
      %s237 = sphi 0, %s237
      %s239 = sphi 0, %s237
      %s240 = sphi 0, %s239
      %s254 = sphi 0, %s240
      %s258 = sphi 0, %s258
      %s260 = sphi 0, %s258
      %s261 = sphi 0, %s260
      %s275 = sphi 0, %s261
      %s279 = sphi 0, %s279
      %s281 = sphi 0, %s279
      %s282 = sphi 0, %s281
      %s296 = sphi 0, %s282
      %s300 = sphi 0, %s300
      %s302 = sphi 0, %s300
      %s303 = sphi 0, %s302
      %s317 = sphi 0, %s303
      %s321 = sphi 0, %s321
      %s323 = sphi 0, %s321
      %s324 = sphi 0, %s323
      %s338 = sphi 0, %s324
      %s342 = sphi 0, %s342
      %s344 = sphi 0, %s342
      %s345 = sphi 0, %s344
      %s359 = sphi 0, %s345
    $region4: #{tpu_custom_call.1} parent=1 // loop_header_branch
      %33 = sbr.rel (%p31) target = $region8
    $region5: #{tpu_custom_call.1} parent=1 // loop_body
      %s35 = ssub.s32 %s30, 1
      %s36 = ssub.s32 %s30, 2
      %s37 = sadd.s32 %s30, 1
      %s38 = ssub.s32 %s30, %s37
      %p39 = scmp.eq.s32.totalorder %s38, 0
      %s41 = sadd.s32 %s40, 1
      %s42 = scalar_select %p39, %s40, %s41
      %p45 = pneg %p39
      %p46 = scmp.eq.s32.totalorder %s30, 2
      %p47 = por %p45, %p46
      %p48 = scmp.ne.s32.totalorder %s40, %s43
      %p49 = scmp.eq.s32.totalorder %s30, 0
      %p50 = por %p48, %p49
      %p51 = scmp.ne.s32.totalorder %s40, %s43
      %p52 = scmp.eq.s32.totalorder %s35, 2
      %p53 = por %p51, %p52
      %p54 = scmp.ne.s32.totalorder %s43, %s44
      %p55 = scmp.eq.s32.totalorder %s35, 0
      %p56 = por %p54, %p55
      %p57 = scmp.ne.s32.totalorder %s43, %s44
      %p58 = scmp.eq.s32.totalorder %s36, 2
      %p59 = por %p57, %p58
      %p61 = scmp.ne.s32.totalorder %s44, %s60
      %p62 = scmp.eq.s32.totalorder %s36, 0
      %p63 = por %p61, %p62
      %s64 = ssub.s32 %s30, %s37
      %p65 = scmp.eq.s32.totalorder %s64, 0
      %s67 = sadd.s32 %s66, 1
      %s68 = scalar_select %p65, %s66, %s67
      %p71 = pneg %p65
      %p72 = scmp.eq.s32.totalorder %s30, 2
      %p73 = por %p71, %p72
      %p74 = scmp.ne.s32.totalorder %s66, %s69
      %p75 = scmp.eq.s32.totalorder %s30, 0
      %p76 = por %p74, %p75
      %p77 = scmp.ne.s32.totalorder %s66, %s69
      %p78 = scmp.eq.s32.totalorder %s35, 2
      %p79 = por %p77, %p78
      %p80 = scmp.ne.s32.totalorder %s69, %s70
      %p81 = scmp.eq.s32.totalorder %s35, 0
      %p82 = por %p80, %p81
      %p83 = scmp.ne.s32.totalorder %s69, %s70
      %p84 = scmp.eq.s32.totalorder %s36, 2
      %p85 = por %p83, %p84
      %p87 = scmp.ne.s32.totalorder %s70, %s86
      %p88 = scmp.eq.s32.totalorder %s36, 0
      %p89 = por %p87, %p88
      %s91 = sadd.s32 %s90, 1
      %p94 = scmp.eq.s32.totalorder %s30, 2
      %p95 = scmp.ne.s32.totalorder %s90, %s92
      %p96 = scmp.eq.s32.totalorder %s30, 0
      %p97 = por %p95, %p96
      %p98 = scmp.ne.s32.totalorder %s90, %s92
      %p99 = scmp.eq.s32.totalorder %s35, 2
      %p100 = por %p98, %p99
      %p101 = scmp.ne.s32.totalorder %s92, %s93
      %p102 = scmp.eq.s32.totalorder %s35, 0
      %p103 = por %p101, %p102
      %p104 = scmp.ne.s32.totalorder %s92, %s93
      %p105 = scmp.eq.s32.totalorder %s36, 2
      %p106 = por %p104, %p105
      %p108 = scmp.ne.s32.totalorder %s93, %s107
      %p109 = scmp.eq.s32.totalorder %s36, 0
      %p110 = por %p108, %p109
      %s112 = sadd.s32 %s111, 1
      %p115 = scmp.eq.s32.totalorder %s30, 2
      %p116 = scmp.ne.s32.totalorder %s111, %s113
      %p117 = scmp.eq.s32.totalorder %s30, 0
      %p118 = por %p116, %p117
      %p119 = scmp.ne.s32.totalorder %s111, %s113
      %p120 = scmp.eq.s32.totalorder %s35, 2
      %p121 = por %p119, %p120
      %p122 = scmp.ne.s32.totalorder %s113, %s114
      %p123 = scmp.eq.s32.totalorder %s35, 0
      %p124 = por %p122, %p123
      %p125 = scmp.ne.s32.totalorder %s113, %s114
      %p126 = scmp.eq.s32.totalorder %s36, 2
      %p127 = por %p125, %p126
      %p129 = scmp.ne.s32.totalorder %s114, %s128
      %p130 = scmp.eq.s32.totalorder %s36, 0
      %p131 = por %p129, %p130
      %s133 = sadd.s32 %s132, 1
      %p136 = scmp.eq.s32.totalorder %s30, 2
      %p137 = scmp.ne.s32.totalorder %s132, %s134
      %p138 = scmp.eq.s32.totalorder %s30, 0
      %p139 = por %p137, %p138
      %p140 = scmp.ne.s32.totalorder %s132, %s134
      %p141 = scmp.eq.s32.totalorder %s35, 2
      %p142 = por %p140, %p141
      %p143 = scmp.ne.s32.totalorder %s134, %s135
      %p144 = scmp.eq.s32.totalorder %s35, 0
      %p145 = por %p143, %p144
      %p146 = scmp.ne.s32.totalorder %s134, %s135
      %p147 = scmp.eq.s32.totalorder %s36, 2
      %p148 = por %p146, %p147
      %p150 = scmp.ne.s32.totalorder %s135, %s149
      %p151 = scmp.eq.s32.totalorder %s36, 0
      %p152 = por %p150, %p151
      %s154 = sadd.s32 %s153, 1
      %p157 = scmp.eq.s32.totalorder %s30, 2
      %p158 = scmp.ne.s32.totalorder %s153, %s155
      %p159 = scmp.eq.s32.totalorder %s30, 0
      %p160 = por %p158, %p159
      %p161 = scmp.ne.s32.totalorder %s153, %s155
      %p162 = scmp.eq.s32.totalorder %s35, 2
      %p163 = por %p161, %p162
      %p164 = scmp.ne.s32.totalorder %s155, %s156
      %p165 = scmp.eq.s32.totalorder %s35, 0
      %p166 = por %p164, %p165
      %p167 = scmp.ne.s32.totalorder %s155, %s156
      %p168 = scmp.eq.s32.totalorder %s36, 2
      %p169 = por %p167, %p168
      %p171 = scmp.ne.s32.totalorder %s156, %s170
      %p172 = scmp.eq.s32.totalorder %s36, 0
      %p173 = por %p171, %p172
      %s175 = sadd.s32 %s174, 1
      %p178 = scmp.eq.s32.totalorder %s30, 2
      %p179 = scmp.ne.s32.totalorder %s174, %s176
      %p180 = scmp.eq.s32.totalorder %s30, 0
      %p181 = por %p179, %p180
      %p182 = scmp.ne.s32.totalorder %s174, %s176
      %p183 = scmp.eq.s32.totalorder %s35, 2
      %p184 = por %p182, %p183
      %p185 = scmp.ne.s32.totalorder %s176, %s177
      %p186 = scmp.eq.s32.totalorder %s35, 0
      %p187 = por %p185, %p186
      %p188 = scmp.ne.s32.totalorder %s176, %s177
      %p189 = scmp.eq.s32.totalorder %s36, 2
      %p190 = por %p188, %p189
      %p192 = scmp.ne.s32.totalorder %s177, %s191
      %p193 = scmp.eq.s32.totalorder %s36, 0
      %p194 = por %p192, %p193
      %s196 = sadd.s32 %s195, 1
      %p199 = scmp.eq.s32.totalorder %s30, 2
      %p200 = scmp.ne.s32.totalorder %s195, %s197
      %p201 = scmp.eq.s32.totalorder %s30, 0
      %p202 = por %p200, %p201
      %p203 = scmp.ne.s32.totalorder %s195, %s197
      %p204 = scmp.eq.s32.totalorder %s35, 2
      %p205 = por %p203, %p204
      %p206 = scmp.ne.s32.totalorder %s197, %s198
      %p207 = scmp.eq.s32.totalorder %s35, 0
      %p208 = por %p206, %p207
      %p209 = scmp.ne.s32.totalorder %s197, %s198
      %p210 = scmp.eq.s32.totalorder %s36, 2
      %p211 = por %p209, %p210
      %p213 = scmp.ne.s32.totalorder %s198, %s212
      %p214 = scmp.eq.s32.totalorder %s36, 0
      %p215 = por %p213, %p214
      %s217 = sadd.s32 %s216, 1
      %p220 = scmp.eq.s32.totalorder %s30, 2
      %p221 = scmp.ne.s32.totalorder %s216, %s218
      %p222 = scmp.eq.s32.totalorder %s30, 0
      %p223 = por %p221, %p222
      %p224 = scmp.ne.s32.totalorder %s216, %s218
      %p225 = scmp.eq.s32.totalorder %s35, 2
      %p226 = por %p224, %p225
      %p227 = scmp.ne.s32.totalorder %s218, %s219
      %p228 = scmp.eq.s32.totalorder %s35, 0
      %p229 = por %p227, %p228
      %p230 = scmp.ne.s32.totalorder %s218, %s219
      %p231 = scmp.eq.s32.totalorder %s36, 2
      %p232 = por %p230, %p231
      %p234 = scmp.ne.s32.totalorder %s219, %s233
      %p235 = scmp.eq.s32.totalorder %s36, 0
      %p236 = por %p234, %p235
      %s238 = sadd.s32 %s237, 1
      %p241 = scmp.eq.s32.totalorder %s30, 2
      %p242 = scmp.ne.s32.totalorder %s237, %s239
      %p243 = scmp.eq.s32.totalorder %s30, 0
      %p244 = por %p242, %p243
      %p245 = scmp.ne.s32.totalorder %s237, %s239
      %p246 = scmp.eq.s32.totalorder %s35, 2
      %p247 = por %p245, %p246
      %p248 = scmp.ne.s32.totalorder %s239, %s240
      %p249 = scmp.eq.s32.totalorder %s35, 0
      %p250 = por %p248, %p249
      %p251 = scmp.ne.s32.totalorder %s239, %s240
      %p252 = scmp.eq.s32.totalorder %s36, 2
      %p253 = por %p251, %p252
      %p255 = scmp.ne.s32.totalorder %s240, %s254
      %p256 = scmp.eq.s32.totalorder %s36, 0
      %p257 = por %p255, %p256
      %s259 = sadd.s32 %s258, 1
      %p262 = scmp.eq.s32.totalorder %s30, 2
      %p263 = scmp.ne.s32.totalorder %s258, %s260
      %p264 = scmp.eq.s32.totalorder %s30, 0
      %p265 = por %p263, %p264
      %p266 = scmp.ne.s32.totalorder %s258, %s260
      %p267 = scmp.eq.s32.totalorder %s35, 2
      %p268 = por %p266, %p267
      %p269 = scmp.ne.s32.totalorder %s260, %s261
      %p270 = scmp.eq.s32.totalorder %s35, 0
      %p271 = por %p269, %p270
      %p272 = scmp.ne.s32.totalorder %s260, %s261
      %p273 = scmp.eq.s32.totalorder %s36, 2
      %p274 = por %p272, %p273
      %p276 = scmp.ne.s32.totalorder %s261, %s275
      %p277 = scmp.eq.s32.totalorder %s36, 0
      %p278 = por %p276, %p277
      %s280 = sadd.s32 %s279, 1
      %p283 = scmp.eq.s32.totalorder %s30, 2
      %p284 = scmp.ne.s32.totalorder %s279, %s281
      %p285 = scmp.eq.s32.totalorder %s30, 0
      %p286 = por %p284, %p285
      %p287 = scmp.ne.s32.totalorder %s279, %s281
      %p288 = scmp.eq.s32.totalorder %s35, 2
      %p289 = por %p287, %p288
      %p290 = scmp.ne.s32.totalorder %s281, %s282
      %p291 = scmp.eq.s32.totalorder %s35, 0
      %p292 = por %p290, %p291
      %p293 = scmp.ne.s32.totalorder %s281, %s282
      %p294 = scmp.eq.s32.totalorder %s36, 2
      %p295 = por %p293, %p294
      %p297 = scmp.ne.s32.totalorder %s282, %s296
      %p298 = scmp.eq.s32.totalorder %s36, 0
      %p299 = por %p297, %p298
      %s301 = sadd.s32 %s300, 1
      %p304 = scmp.eq.s32.totalorder %s30, 2
      %p305 = scmp.ne.s32.totalorder %s300, %s302
      %p306 = scmp.eq.s32.totalorder %s30, 0
      %p307 = por %p305, %p306
      %p308 = scmp.ne.s32.totalorder %s300, %s302
      %p309 = scmp.eq.s32.totalorder %s35, 2
      %p310 = por %p308, %p309
      %p311 = scmp.ne.s32.totalorder %s302, %s303
      %p312 = scmp.eq.s32.totalorder %s35, 0
      %p313 = por %p311, %p312
      %p314 = scmp.ne.s32.totalorder %s302, %s303
      %p315 = scmp.eq.s32.totalorder %s36, 2
      %p316 = por %p314, %p315
      %p318 = scmp.ne.s32.totalorder %s303, %s317
      %p319 = scmp.eq.s32.totalorder %s36, 0
      %p320 = por %p318, %p319
      %s322 = sadd.s32 %s321, 1
      %p325 = scmp.eq.s32.totalorder %s30, 2
      %p326 = scmp.ne.s32.totalorder %s321, %s323
      %p327 = scmp.eq.s32.totalorder %s30, 0
      %p328 = por %p326, %p327
      %p329 = scmp.ne.s32.totalorder %s321, %s323
      %p330 = scmp.eq.s32.totalorder %s35, 2
      %p331 = por %p329, %p330
      %p332 = scmp.ne.s32.totalorder %s323, %s324
      %p333 = scmp.eq.s32.totalorder %s35, 0
      %p334 = por %p332, %p333
      %p335 = scmp.ne.s32.totalorder %s323, %s324
      %p336 = scmp.eq.s32.totalorder %s36, 2
      %p337 = por %p335, %p336
      %p339 = scmp.ne.s32.totalorder %s324, %s338
      %p340 = scmp.eq.s32.totalorder %s36, 0
      %p341 = por %p339, %p340
      %s343 = sadd.s32 %s342, 1
      %p346 = scmp.eq.s32.totalorder %s30, 2
      %p347 = scmp.ne.s32.totalorder %s342, %s344
      %p348 = scmp.eq.s32.totalorder %s30, 0
      %p349 = por %p347, %p348
      %p350 = scmp.ne.s32.totalorder %s342, %s344
      %p351 = scmp.eq.s32.totalorder %s35, 2
      %p352 = por %p350, %p351
      %p353 = scmp.ne.s32.totalorder %s344, %s345
      %p354 = scmp.eq.s32.totalorder %s35, 0
      %p355 = por %p353, %p354
      %p356 = scmp.ne.s32.totalorder %s344, %s345
      %p357 = scmp.eq.s32.totalorder %s36, 2
      %p358 = por %p356, %p357
      %p360 = scmp.ne.s32.totalorder %s345, %s359
      %p361 = scmp.eq.s32.totalorder %s36, 0
      %p362 = por %p360, %p361
      %p363 = scmp.le.s32.totalorder 1, %s30
      %p364 = scmp.lt.s32.totalorder %s30, 4
      %p365 = pnand %p363, %p364
      %p366 = pneg %p365
      // Predicated region
      $region9: #{tpu_custom_call.1} parent=5 // pred_check
        _
      $region10: #{tpu_custom_call.1} parent=5 // pred_check_branch
        %368 = sbr.rel (%p365) target = $region12
      $region11: #{tpu_custom_call.1} parent=5 // pred_region
        %s369 = ssub.s32 %s30, 1
        // Predicated region
        $region13: #{tpu_custom_call.1} parent=11 // pred_check
          %p370 = pneg %p103
        $region14: #{tpu_custom_call.1} parent=11 // pred_check_branch
          %372 = sbr.rel (%p370) target = $region16
        $region15: #{tpu_custom_call.1} parent=11 // pred_region
          %s374 = ssub.s32 2048, 2048
          %375 = vsyncadd [#allocation8], %s374
          %s376 = sshll.u32 [#allocation9], 4
          %s377 = int_to_ptr.vmem [resolvable:$true] %s376
          %382 = dma.hbm_to_vmem [thread:$0]  %s2, 2048, %s377, [#allocation8], 128, 128, 8
        $region16: #{tpu_custom_call.1} parent=11 // pred_fallthru
          _
        // Predicated region
        $region17: #{tpu_custom_call.1} parent=11 // pred_check
          %p383 = pneg %p124
        $region18: #{tpu_custom_call.1} parent=11 // pred_check_branch
          %385 = sbr.rel (%p383) target = $region20
        $region19: #{tpu_custom_call.1} parent=11 // pred_region
          _
        $region20: #{tpu_custom_call.1} parent=11 // pred_fallthru
          _
        // Predicated region
        $region21: #{tpu_custom_call.1} parent=11 // pred_check
          %p386 = pneg %p145
        $region22: #{tpu_custom_call.1} parent=11 // pred_check_branch
          %388 = sbr.rel (%p386) target = $region24
        $region23: #{tpu_custom_call.1} parent=11 // pred_region
          %s390 = ssub.s32 2048, 2048
          %391 = vsyncadd [#allocation11], %s390
          %s392 = sshll.u32 [#allocation10], 4
          %s393 = int_to_ptr.vmem [resolvable:$true] %s392
          %398 = dma.hbm_to_vmem [thread:$0]  %s4, 2048, %s393, [#allocation11], 128, 128, 8
        $region24: #{tpu_custom_call.1} parent=11 // pred_fallthru
          _
        // Predicated region
        $region25: #{tpu_custom_call.1} parent=11 // pred_check
          %p399 = pneg %p166
        $region26: #{tpu_custom_call.1} parent=11 // pred_check_branch
          %401 = sbr.rel (%p399) target = $region28
        $region27: #{tpu_custom_call.1} parent=11 // pred_region
          _
        $region28: #{tpu_custom_call.1} parent=11 // pred_fallthru
          _
        // Predicated region
        $region29: #{tpu_custom_call.1} parent=11 // pred_check
          %p402 = pneg %p187
        $region30: #{tpu_custom_call.1} parent=11 // pred_check_branch
          %404 = sbr.rel (%p402) target = $region32
        $region31: #{tpu_custom_call.1} parent=11 // pred_region
          %s406 = ssub.s32 2048, 2048
          %407 = vsyncadd [#allocation11], %s406
          %s408 = sshll.u32 [#allocation12], 4
          %s409 = int_to_ptr.vmem [resolvable:$true] %s408
          %414 = dma.hbm_to_vmem [thread:$0]  %s6, 2048, %s409, [#allocation11], 128, 128, 8
        $region32: #{tpu_custom_call.1} parent=11 // pred_fallthru
          _
        // Predicated region
        $region33: #{tpu_custom_call.1} parent=11 // pred_check
          %p415 = pneg %p208
        $region34: #{tpu_custom_call.1} parent=11 // pred_check_branch
          %417 = sbr.rel (%p415) target = $region36
        $region35: #{tpu_custom_call.1} parent=11 // pred_region
          _
        $region36: #{tpu_custom_call.1} parent=11 // pred_fallthru
          _
        // Predicated region
        $region37: #{tpu_custom_call.1} parent=11 // pred_check
          %p418 = pneg %p229
        $region38: #{tpu_custom_call.1} parent=11 // pred_check_branch
          %420 = sbr.rel (%p418) target = $region40
        $region39: #{tpu_custom_call.1} parent=11 // pred_region
          %s422 = ssub.s32 2048, 2048
          %423 = vsyncadd [#allocation14], %s422
          %s424 = sshll.u32 [#allocation13], 4
          %s425 = int_to_ptr.vmem [resolvable:$true] %s424
          %430 = dma.hbm_to_vmem [thread:$0]  %s8, 2048, %s425, [#allocation14], 128, 128, 8
        $region40: #{tpu_custom_call.1} parent=11 // pred_fallthru
          _
        // Predicated region
        $region41: #{tpu_custom_call.1} parent=11 // pred_check
          %p431 = pneg %p250
        $region42: #{tpu_custom_call.1} parent=11 // pred_check_branch
          %433 = sbr.rel (%p431) target = $region44
        $region43: #{tpu_custom_call.1} parent=11 // pred_region
          _
        $region44: #{tpu_custom_call.1} parent=11 // pred_fallthru
          _
        // Predicated region
        $region45: #{tpu_custom_call.1} parent=11 // pred_check
          %p434 = pneg %p271
        $region46: #{tpu_custom_call.1} parent=11 // pred_check_branch
          %436 = sbr.rel (%p434) target = $region48
        $region47: #{tpu_custom_call.1} parent=11 // pred_region
          %s438 = ssub.s32 2048, 2048
          %439 = vsyncadd [#allocation14], %s438
          %s440 = sshll.u32 [#allocation15], 4
          %s441 = int_to_ptr.vmem [resolvable:$true] %s440
          %446 = dma.hbm_to_vmem [thread:$0]  %s10, 2048, %s441, [#allocation14], 128, 128, 8
        $region48: #{tpu_custom_call.1} parent=11 // pred_fallthru
          _
        // Predicated region
        $region49: #{tpu_custom_call.1} parent=11 // pred_check
          %p447 = pneg %p292
        $region50: #{tpu_custom_call.1} parent=11 // pred_check_branch
          %449 = sbr.rel (%p447) target = $region52
        $region51: #{tpu_custom_call.1} parent=11 // pred_region
          _
        $region52: #{tpu_custom_call.1} parent=11 // pred_fallthru
          _
        // Predicated region
        $region53: #{tpu_custom_call.1} parent=11 // pred_check
          %p450 = pneg %p313
        $region54: #{tpu_custom_call.1} parent=11 // pred_check_branch
          %452 = sbr.rel (%p450) target = $region56
        $region55: #{tpu_custom_call.1} parent=11 // pred_region
          %s454 = ssub.s32 2048, 2048
          %455 = vsyncadd [#allocation17], %s454
          %s456 = sshll.u32 [#allocation16], 4
          %s457 = int_to_ptr.vmem [resolvable:$true] %s456
          %462 = dma.hbm_to_vmem [thread:$0]  %s12, 2048, %s457, [#allocation17], 128, 128, 8
        $region56: #{tpu_custom_call.1} parent=11 // pred_fallthru
          _
        // Predicated region
        $region57: #{tpu_custom_call.1} parent=11 // pred_check
          %p463 = pneg %p334
        $region58: #{tpu_custom_call.1} parent=11 // pred_check_branch
          %465 = sbr.rel (%p463) target = $region60
        $region59: #{tpu_custom_call.1} parent=11 // pred_region
          _
        $region60: #{tpu_custom_call.1} parent=11 // pred_fallthru
          _
      $region12: #{tpu_custom_call.1} parent=5 // pred_fallthru
        _
      %p466 = scmp.lt.s32.totalorder %s30, 3
      // Predicated region
      $region61: #{tpu_custom_call.1} parent=5 // pred_check
        %p467 = pneg %p466
      $region62: #{tpu_custom_call.1} parent=5 // pred_check_branch
        %469 = sbr.rel (%p467) target = $region64
      $region63: #{tpu_custom_call.1} parent=5 // pred_region
        // Predicated region
        $region65: #{tpu_custom_call.1} parent=63 // pred_check
          %p470 = pneg %p50
        $region66: #{tpu_custom_call.1} parent=63 // pred_check_branch
          %472 = sbr.rel (%p470) target = $region68
        $region67: #{tpu_custom_call.1} parent=63 // pred_region
          %s473 = sand.u32 %s40, 1
          %s474 = scalar_lea.sflag [#allocation5], %s473
          %s475 = sand.u32 %s40, 1
          %s476 = scalar_lea.vmem [#allocation4], %s475
          %s478 = ssub.s32 16, 16
          %479 = vsyncadd %s474, %s478
          %s480 = smul.addr %s30, 16
          %s481 = scalar_lea.hbm %s0, %s480
          %s483 = sshll.u32 %s476, 4
          %s484 = int_to_ptr.vmem [resolvable:$true] %s483
          %486 = dma.hbm_to_vmem [thread:$0]  %s481, 16, %s484, %s474
        $region68: #{tpu_custom_call.1} parent=63 // pred_fallthru
          _
        // Predicated region
        $region69: #{tpu_custom_call.1} parent=63 // pred_check
          %p487 = pneg %p76
        $region70: #{tpu_custom_call.1} parent=63 // pred_check_branch
          %489 = sbr.rel (%p487) target = $region72
        $region71: #{tpu_custom_call.1} parent=63 // pred_region
          %s490 = sand.u32 %s30, 1
          %s491 = scalar_lea.sflag [#allocation8], %s490
          %s492 = sand.u32 %s66, 1
          %s493 = smul.addr %s492, 128
          %s494 = scalar_lea.vmem [#allocation7], %s493
          %s495 = smul.u32 16, %s30
          %s497 = ssub.s32 2048, 2048
          %498 = vsyncadd %s491, %s497
          %s499 = smul.addr %s495, 128
          %s500 = scalar_lea.hbm %s1, %s499
          %s501 = sshll.u32 %s494, 4
          %s502 = int_to_ptr.vmem [resolvable:$true] %s501
          %507 = dma.hbm_to_vmem [thread:$0]  %s500, 2048, %s502, %s491, 128, 128, 8
        $region72: #{tpu_custom_call.1} parent=63 // pred_fallthru
          _
      $region64: #{tpu_custom_call.1} parent=5 // pred_fallthru
        _
      %p508 = scmp.le.s32.totalorder 1, %s30
      %p509 = scmp.lt.s32.totalorder %s30, 4
      %p510 = pnand %p508, %p509
      %p511 = pneg %p510
      // Predicated region
      $region73: #{tpu_custom_call.1} parent=5 // pred_check
        _
      $region74: #{tpu_custom_call.1} parent=5 // pred_check_branch
        %513 = sbr.rel (%p510) target = $region76
      $region75: #{tpu_custom_call.1} parent=5 // pred_region
        %s514 = ssub.s32 %s30, 1
        %s515 = sand.u32 %s43, 1
        %s516 = scalar_lea.sflag [#allocation5], %s515
        %s517 = sand.u32 %s43, 1
        %s518 = scalar_lea.vmem [#allocation4], %s517
        // Predicated region
        $region77: #{tpu_custom_call.1} parent=75 // pred_check
          %p519 = pneg %p56
        $region78: #{tpu_custom_call.1} parent=75 // pred_check_branch
          %521 = sbr.rel (%p519) target = $region80
        $region79: #{tpu_custom_call.1} parent=75 // pred_region
          %522 = dma.done %s516, 16
        $region80: #{tpu_custom_call.1} parent=75 // pred_fallthru
          _
        %s523 = sand.u32 %s35, 1
        %s524 = scalar_lea.sflag [#allocation8], %s523
        %s525 = sand.u32 %s69, 1
        %s526 = smul.addr %s525, 128
        %s527 = scalar_lea.vmem [#allocation7], %s526
        // Predicated region
        $region81: #{tpu_custom_call.1} parent=75 // pred_check
          %p528 = pneg %p82
        $region82: #{tpu_custom_call.1} parent=75 // pred_check_branch
          %530 = sbr.rel (%p528) target = $region84
        $region83: #{tpu_custom_call.1} parent=75 // pred_region
          %531 = dma.done %s524, 2048
        $region84: #{tpu_custom_call.1} parent=75 // pred_fallthru
          _
        // Predicated region
        $region85: #{tpu_custom_call.1} parent=75 // pred_check
          %p532 = pneg %p103
        $region86: #{tpu_custom_call.1} parent=75 // pred_check_branch
          %534 = sbr.rel (%p532) target = $region88
        $region87: #{tpu_custom_call.1} parent=75 // pred_region
          %535 = dma.done [#allocation8], 2048
        $region88: #{tpu_custom_call.1} parent=75 // pred_fallthru
          _
        // Predicated region
        $region89: #{tpu_custom_call.1} parent=75 // pred_check
          %p536 = pneg %p145
        $region90: #{tpu_custom_call.1} parent=75 // pred_check_branch
          %538 = sbr.rel (%p536) target = $region92
        $region91: #{tpu_custom_call.1} parent=75 // pred_region
          %539 = dma.done [#allocation11], 2048
        $region92: #{tpu_custom_call.1} parent=75 // pred_fallthru
          _
        // Predicated region
        $region93: #{tpu_custom_call.1} parent=75 // pred_check
          %p540 = pneg %p187
        $region94: #{tpu_custom_call.1} parent=75 // pred_check_branch
          %542 = sbr.rel (%p540) target = $region96
        $region95: #{tpu_custom_call.1} parent=75 // pred_region
          %543 = dma.done [#allocation11], 2048
        $region96: #{tpu_custom_call.1} parent=75 // pred_fallthru
          _
        // Predicated region
        $region97: #{tpu_custom_call.1} parent=75 // pred_check
          %p544 = pneg %p229
        $region98: #{tpu_custom_call.1} parent=75 // pred_check_branch
          %546 = sbr.rel (%p544) target = $region100
        $region99: #{tpu_custom_call.1} parent=75 // pred_region
          %547 = dma.done [#allocation14], 2048
        $region100: #{tpu_custom_call.1} parent=75 // pred_fallthru
          _
        // Predicated region
        $region101: #{tpu_custom_call.1} parent=75 // pred_check
          %p548 = pneg %p271
        $region102: #{tpu_custom_call.1} parent=75 // pred_check_branch
          %550 = sbr.rel (%p548) target = $region104
        $region103: #{tpu_custom_call.1} parent=75 // pred_region
          %551 = dma.done [#allocation14], 2048
        $region104: #{tpu_custom_call.1} parent=75 // pred_fallthru
          _
        // Predicated region
        $region105: #{tpu_custom_call.1} parent=75 // pred_check
          %p552 = pneg %p313
        $region106: #{tpu_custom_call.1} parent=75 // pred_check_branch
          %554 = sbr.rel (%p552) target = $region108
        $region107: #{tpu_custom_call.1} parent=75 // pred_region
          %555 = dma.done [#allocation17], 2048
        $region108: #{tpu_custom_call.1} parent=75 // pred_fallthru
          _
        %s556 = sand.u32 %s43, 1
        %s557 = scalar_lea.sflag [#allocation5], %s556
        %s558 = sand.u32 %s43, 1
        %s559 = scalar_lea.vmem [#allocation4], %s558
        %p560 = pneg %p56
        %p561 = pneg %p53
        %s562 = sand.u32 %s35, 1
        %s563 = scalar_lea.sflag [#allocation8], %s562
        %s564 = sand.u32 %s69, 1
        %s565 = smul.addr %s564, 128
        %s566 = scalar_lea.vmem [#allocation7], %s565
        %p567 = pneg %p82
        %p568 = pneg %p79
        %p569 = pneg %p103
        %p570 = pneg %p100
        %p571 = pneg %p124
        %p572 = pneg %p121
        %p573 = pneg %p145
        %p574 = pneg %p142
        %p575 = pneg %p166
        %p576 = pneg %p163
        %p577 = pneg %p187
        %p578 = pneg %p184
        %p579 = pneg %p208
        %p580 = pneg %p205
        %p581 = pneg %p229
        %p582 = pneg %p226
        %p583 = pneg %p250
        %p584 = pneg %p247
        %p585 = pneg %p271
        %p586 = pneg %p268
        %p587 = pneg %p292
        %p588 = pneg %p289
        %p589 = pneg %p313
        %p590 = pneg %p310
        %p591 = pneg %p334
        %p592 = pneg %p331
        %p593 = pneg %p355
        %p594 = pneg %p352
        %s595 = smul.u32 16, %s35
        %p596 = scmp.eq.s32.totalorder %s35, 0
        // Predicated region
        $region109: #{tpu_custom_call.1} parent=75 // pred_check
          %p597 = pneg %p596
        $region110: #{tpu_custom_call.1} parent=75 // pred_check_branch
          %599 = sbr.rel (%p597) target = $region112
        $region111: #{tpu_custom_call.1} parent=75 // pred_region
          %600 = vst [vmem:[#allocation2] sm:$0xff] 0.0
          %vm601 = vcmask 7168
          %602 = vst.msk [vmem:[#allocation3] sm:$0xff] %vm601, 0.0
        $region112: #{tpu_custom_call.1} parent=75 // pred_fallthru
          _
        %v603 = vld [vmem:[%s527] sm:$0xff]
        %v604 = vld [vmem:[%s527 + $0x8] sm:$0xff]
        %v605 = vld [vmem:[%s527 + $0x10] sm:$0xff]
        %v606 = vld [vmem:[%s527 + $0x18] sm:$0xff]
        %v607 = vld [vmem:[%s527 + $0x20] sm:$0xff]
        %v608 = vld [vmem:[%s527 + $0x28] sm:$0xff]
        %v609 = vld [vmem:[%s527 + $0x30] sm:$0xff]
        %v610 = vld [vmem:[%s527 + $0x38] sm:$0xff]
        %v611 = vld [vmem:[%s527 + $0x40] sm:$0xff]
        %v612 = vld [vmem:[%s527 + $0x48] sm:$0xff]
        %v613 = vld [vmem:[%s527 + $0x50] sm:$0xff]
        %v614 = vld [vmem:[%s527 + $0x58] sm:$0xff]
        %v615 = vld [vmem:[%s527 + $0x60] sm:$0xff]
        %v616 = vld [vmem:[%s527 + $0x68] sm:$0xff]
        %v617 = vld [vmem:[%s527 + $0x70] sm:$0xff]
        %v618 = vld [vmem:[%s527 + $0x78] sm:$0xff]
        %v619 = vld [vmem:[#allocation9] sm:$0xff]
        %v620 = vld [vmem:[#allocation9 + $0x8] sm:$0xff]
        %v621 = vld [vmem:[#allocation9 + $0x10] sm:$0xff]
        %v622 = vld [vmem:[#allocation9 + $0x18] sm:$0xff]
        %v623 = vld [vmem:[#allocation9 + $0x20] sm:$0xff]
        %v624 = vld [vmem:[#allocation9 + $0x28] sm:$0xff]
        %v625 = vld [vmem:[#allocation9 + $0x30] sm:$0xff]
        %v626 = vld [vmem:[#allocation9 + $0x38] sm:$0xff]
        %v627 = vld [vmem:[#allocation9 + $0x40] sm:$0xff]
        %v628 = vld [vmem:[#allocation9 + $0x48] sm:$0xff]
        %v629 = vld [vmem:[#allocation9 + $0x50] sm:$0xff]
        %v630 = vld [vmem:[#allocation9 + $0x58] sm:$0xff]
        %v631 = vld [vmem:[#allocation9 + $0x60] sm:$0xff]
        %v632 = vld [vmem:[#allocation9 + $0x68] sm:$0xff]
        %v633 = vld [vmem:[#allocation9 + $0x70] sm:$0xff]
        %v634 = vld [vmem:[#allocation9 + $0x78] sm:$0xff]
        %v635 = vld [vmem:[%s3] sm:$0x1]
        %v637 = vlaneseq
        %v638 = vshrl.u32 %v637, 7
        %v639 = vsub.s32 0, %v638
        %v640 = vrot.slane %v635, %v639
        %642 = vmatprep.subr.mxu0 0.0
        %643 = vmatpush1.msra.mxu0 %v619
        %644 = vmatprep.subr.mxu0 0.0
        %645 = vmatpush1.msra.mxu0 %v620
        %646 = vmatprep.subr.mxu0 0.0
        %647 = vmatpush1.msra.mxu0 %v621
        %648 = vmatprep.subr.mxu0 0.0
        %649 = vmatpush1.msra.mxu0 %v622
        %650 = vmatprep.subr.mxu0 0.0
        %651 = vmatpush1.msra.mxu0 %v623
        %652 = vmatprep.subr.mxu0 0.0
        %653 = vmatpush1.msra.mxu0 %v624
        %654 = vmatprep.subr.mxu0 0.0
        %655 = vmatpush1.msra.mxu0 %v625
        %656 = vmatprep.subr.mxu0 0.0
        %657 = vmatpush1.msra.mxu0 %v626
        %658 = vmatprep.subr.mxu0 0.0
        %659 = vmatpush1.msra.mxu0 %v627
        %660 = vmatprep.subr.mxu0 0.0
        %661 = vmatpush1.msra.mxu0 %v628
        %662 = vmatprep.subr.mxu0 0.0
        %663 = vmatpush1.msra.mxu0 %v629
        %664 = vmatprep.subr.mxu0 0.0
        %665 = vmatpush1.msra.mxu0 %v630
        %666 = vmatprep.subr.mxu0 0.0
        %667 = vmatpush1.msra.mxu0 %v631
        %668 = vmatprep.subr.mxu0 0.0
        %669 = vmatpush1.msra.mxu0 %v632
        %670 = vmatprep.subr.mxu0 0.0
        %671 = vmatpush1.msra.mxu0 %v633
        %672 = vmatprep.subr.mxu0 0.0
        %673 = vmatpush1.msra.mxu0 %v634
        %674 = vmatprep.subr.mxu0 0.0
        %675 = vmatpush1.msra.mxu0 0.0
        %676 = vmatprep.subr.mxu0 0.0
        %677 = vmatpush1.msra.mxu0 0.0
        %678 = vmatprep.subr.mxu0 0.0
        %679 = vmatpush1.msra.mxu0 0.0
        %680 = vmatprep.subr.mxu0 0.0
        %681 = vmatpush1.msra.mxu0 0.0
        %682 = vmatprep.subr.mxu0 0.0
        %683 = vmatpush1.msra.mxu0 0.0
        %684 = vmatprep.subr.mxu0 0.0
        %685 = vmatpush1.msra.mxu0 0.0
        %686 = vmatprep.subr.mxu0 0.0
        %687 = vmatpush1.msra.mxu0 0.0
        %688 = vmatprep.subr.mxu0 0.0
        %689 = vmatpush1.msra.mxu0 0.0
        %690 = vmatprep.subr.mxu0 0.0
        %691 = vmatpush1.msra.mxu0 0.0
        %692 = vmatprep.subr.mxu0 0.0
        %693 = vmatpush1.msra.mxu0 0.0
        %694 = vmatprep.subr.mxu0 0.0
        %695 = vmatpush1.msra.mxu0 0.0
        %696 = vmatprep.subr.mxu0 0.0
        %697 = vmatpush1.msra.mxu0 0.0
        %698 = vmatprep.subr.mxu0 0.0
        %699 = vmatpush1.msra.mxu0 0.0
        %700 = vmatprep.subr.mxu0 0.0
        %701 = vmatpush1.msra.mxu0 0.0
        %702 = vmatprep.subr.mxu0 0.0
        %703 = vmatpush1.msra.mxu0 0.0
        %704 = vmatprep.subr.mxu0 0.0
        %705 = vmatpush1.msra.mxu0 0.0
        %706 = vmatprep.mubr.f32.mxu0 0.0
        %707 = vmatmul.mubr.f32.gmra.mrb[0].mxu0 %v603
        %v708 = vpop.f32.mrb[0].mxu0
        %v709 = vadd.f32 %v640, %v708
        %v710 = vpop.f32.mrb[0].mxu0
        %711 = vmatprep.mubr.f32.mxu0 0.0
        %712 = vmatmul.mubr.f32.gmra.mrb[0].mxu0 %v604
        %v713 = vpop.f32.mrb[0].mxu0
        %v714 = vadd.f32 %v640, %v713
        %v715 = vpop.f32.mrb[0].mxu0
        %716 = vmatprep.mubr.f32.mxu0 0.0
        %717 = vmatmul.mubr.f32.gmra.mrb[0].mxu0 %v605
        %v718 = vpop.f32.mrb[0].mxu0
        %v719 = vadd.f32 %v640, %v718
        %v720 = vpop.f32.mrb[0].mxu0
        %721 = vmatprep.mubr.f32.mxu0 0.0
        %722 = vmatmul.mubr.f32.gmra.mrb[0].mxu0 %v606
        %v723 = vpop.f32.mrb[0].mxu0
        %v724 = vadd.f32 %v640, %v723
        %v725 = vpop.f32.mrb[0].mxu0
        %726 = vmatprep.mubr.f32.mxu0 0.0
        %727 = vmatmul.mubr.f32.gmra.mrb[0].mxu0 %v607
        %v728 = vpop.f32.mrb[0].mxu0
        %v729 = vadd.f32 %v640, %v728
        %v730 = vpop.f32.mrb[0].mxu0
        %731 = vmatprep.mubr.f32.mxu0 0.0
        %732 = vmatmul.mubr.f32.gmra.mrb[0].mxu0 %v608
        %v733 = vpop.f32.mrb[0].mxu0
        %v734 = vadd.f32 %v640, %v733
        %v735 = vpop.f32.mrb[0].mxu0
        %736 = vmatprep.mubr.f32.mxu0 0.0
        %737 = vmatmul.mubr.f32.gmra.mrb[0].mxu0 %v609
        %v738 = vpop.f32.mrb[0].mxu0
        %v739 = vadd.f32 %v640, %v738
        %v740 = vpop.f32.mrb[0].mxu0
        %741 = vmatprep.mubr.f32.mxu0 0.0
        %742 = vmatmul.mubr.f32.gmra.mrb[0].mxu0 %v610
        %v743 = vpop.f32.mrb[0].mxu0
        %v744 = vadd.f32 %v640, %v743
        %v745 = vpop.f32.mrb[0].mxu0
        %746 = vmatprep.mubr.f32.mxu0 0.0
        %747 = vmatmul.mubr.f32.gmra.mrb[0].mxu0 %v611
        %v748 = vpop.f32.mrb[0].mxu0
        %v749 = vadd.f32 %v640, %v748
        %v750 = vpop.f32.mrb[0].mxu0
        %751 = vmatprep.mubr.f32.mxu0 0.0
        %752 = vmatmul.mubr.f32.gmra.mrb[0].mxu0 %v612
        %v753 = vpop.f32.mrb[0].mxu0
        %v754 = vadd.f32 %v640, %v753
        %v755 = vpop.f32.mrb[0].mxu0
        %756 = vmatprep.mubr.f32.mxu0 0.0
        %757 = vmatmul.mubr.f32.gmra.mrb[0].mxu0 %v613
        %v758 = vpop.f32.mrb[0].mxu0
        %v759 = vadd.f32 %v640, %v758
        %v760 = vpop.f32.mrb[0].mxu0
        %761 = vmatprep.mubr.f32.mxu0 0.0
        %762 = vmatmul.mubr.f32.gmra.mrb[0].mxu0 %v614
        %v763 = vpop.f32.mrb[0].mxu0
        %v764 = vadd.f32 %v640, %v763
        %v765 = vpop.f32.mrb[0].mxu0
        %766 = vmatprep.mubr.f32.mxu0 0.0
        %767 = vmatmul.mubr.f32.gmra.mrb[0].mxu0 %v615
        %v768 = vpop.f32.mrb[0].mxu0
        %v769 = vadd.f32 %v640, %v768
        %v770 = vpop.f32.mrb[0].mxu0
        %771 = vmatprep.mubr.f32.mxu0 0.0
        %772 = vmatmul.mubr.f32.gmra.mrb[0].mxu0 %v616
        %v773 = vpop.f32.mrb[0].mxu0
        %v774 = vadd.f32 %v640, %v773
        %v775 = vpop.f32.mrb[0].mxu0
        %776 = vmatprep.mubr.f32.mxu0 0.0
        %777 = vmatmul.mubr.f32.gmra.mrb[0].mxu0 %v617
        %v778 = vpop.f32.mrb[0].mxu0
        %v779 = vadd.f32 %v640, %v778
        %v780 = vpop.f32.mrb[0].mxu0
        %781 = vmatprep.mubr.f32.mxu0 0.0
        %782 = vmatmul.mubr.f32.gmra.mrb[0].mxu0 %v618
        %v783 = vpop.f32.mrb[0].mxu0
        %v784 = vadd.f32 %v640, %v783
        %v785 = vpop.f32.mrb[0].mxu0
        %786 = vdwg.mxu0
        %v787 = vmax.f32 %v709, 0.0
        %v788 = vmax.f32 %v714, 0.0
        %v789 = vmax.f32 %v719, 0.0
        %v790 = vmax.f32 %v724, 0.0
        %v791 = vmax.f32 %v729, 0.0
        %v792 = vmax.f32 %v734, 0.0
        %v793 = vmax.f32 %v739, 0.0
        %v794 = vmax.f32 %v744, 0.0
        %v795 = vmax.f32 %v749, 0.0
        %v796 = vmax.f32 %v754, 0.0
        %v797 = vmax.f32 %v759, 0.0
        %v798 = vmax.f32 %v764, 0.0
        %v799 = vmax.f32 %v769, 0.0
        %v800 = vmax.f32 %v774, 0.0
        %v801 = vmax.f32 %v779, 0.0
        %v802 = vmax.f32 %v784, 0.0
        %v803 = vld [vmem:[#allocation10] sm:$0xff]
        %v804 = vld [vmem:[#allocation10 + $0x8] sm:$0xff]
        %v805 = vld [vmem:[#allocation10 + $0x10] sm:$0xff]
        %v806 = vld [vmem:[#allocation10 + $0x18] sm:$0xff]
        %v807 = vld [vmem:[#allocation10 + $0x20] sm:$0xff]
        %v808 = vld [vmem:[#allocation10 + $0x28] sm:$0xff]
        %v809 = vld [vmem:[#allocation10 + $0x30] sm:$0xff]
        %v810 = vld [vmem:[#allocation10 + $0x38] sm:$0xff]
        %v811 = vld [vmem:[#allocation10 + $0x40] sm:$0xff]
        %v812 = vld [vmem:[#allocation10 + $0x48] sm:$0xff]
        %v813 = vld [vmem:[#allocation10 + $0x50] sm:$0xff]
        %v814 = vld [vmem:[#allocation10 + $0x58] sm:$0xff]
        %v815 = vld [vmem:[#allocation10 + $0x60] sm:$0xff]
        %v816 = vld [vmem:[#allocation10 + $0x68] sm:$0xff]
        %v817 = vld [vmem:[#allocation10 + $0x70] sm:$0xff]
        %v818 = vld [vmem:[#allocation10 + $0x78] sm:$0xff]
        %v819 = vld [vmem:[%s5] sm:$0x1]
        %v821 = vlaneseq
        %v822 = vshrl.u32 %v821, 7
        %v823 = vsub.s32 0, %v822
        %v824 = vrot.slane %v819, %v823
        %826 = vmatprep.subr.mxu0 0.0
        %827 = vmatpush1.msra.mxu0 %v803
        %828 = vmatprep.subr.mxu0 0.0
        %829 = vmatpush1.msra.mxu0 %v804
        %830 = vmatprep.subr.mxu0 0.0
        %831 = vmatpush1.msra.mxu0 %v805
        %832 = vmatprep.subr.mxu0 0.0
        %833 = vmatpush1.msra.mxu0 %v806
        %834 = vmatprep.subr.mxu0 0.0
        %835 = vmatpush1.msra.mxu0 %v807
        %836 = vmatprep.subr.mxu0 0.0
        %837 = vmatpush1.msra.mxu0 %v808
        %838 = vmatprep.subr.mxu0 0.0
        %839 = vmatpush1.msra.mxu0 %v809
        %840 = vmatprep.subr.mxu0 0.0
        %841 = vmatpush1.msra.mxu0 %v810
        %842 = vmatprep.subr.mxu0 0.0
        %843 = vmatpush1.msra.mxu0 %v811
        %844 = vmatprep.subr.mxu0 0.0
        %845 = vmatpush1.msra.mxu0 %v812
        %846 = vmatprep.subr.mxu0 0.0
        %847 = vmatpush1.msra.mxu0 %v813
        %848 = vmatprep.subr.mxu0 0.0
        %849 = vmatpush1.msra.mxu0 %v814
        %850 = vmatprep.subr.mxu0 0.0
        %851 = vmatpush1.msra.mxu0 %v815
        %852 = vmatprep.subr.mxu0 0.0
        %853 = vmatpush1.msra.mxu0 %v816
        %854 = vmatprep.subr.mxu0 0.0
        %855 = vmatpush1.msra.mxu0 %v817
        %856 = vmatprep.subr.mxu0 0.0
        %857 = vmatpush1.msra.mxu0 %v818
        %858 = vmatprep.subr.mxu0 0.0
        %859 = vmatpush1.msra.mxu0 0.0
        %860 = vmatprep.subr.mxu0 0.0
        %861 = vmatpush1.msra.mxu0 0.0
        %862 = vmatprep.subr.mxu0 0.0
        %863 = vmatpush1.msra.mxu0 0.0
        %864 = vmatprep.subr.mxu0 0.0
        %865 = vmatpush1.msra.mxu0 0.0
        %866 = vmatprep.subr.mxu0 0.0
        %867 = vmatpush1.msra.mxu0 0.0
        %868 = vmatprep.subr.mxu0 0.0
        %869 = vmatpush1.msra.mxu0 0.0
        %870 = vmatprep.subr.mxu0 0.0
        %871 = vmatpush1.msra.mxu0 0.0
        %872 = vmatprep.subr.mxu0 0.0
        %873 = vmatpush1.msra.mxu0 0.0
        %874 = vmatprep.subr.mxu0 0.0
        %875 = vmatpush1.msra.mxu0 0.0
        %876 = vmatprep.subr.mxu0 0.0
        %877 = vmatpush1.msra.mxu0 0.0
        %878 = vmatprep.subr.mxu0 0.0
        %879 = vmatpush1.msra.mxu0 0.0
        %880 = vmatprep.subr.mxu0 0.0
        %881 = vmatpush1.msra.mxu0 0.0
        %882 = vmatprep.subr.mxu0 0.0
        %883 = vmatpush1.msra.mxu0 0.0
        %884 = vmatprep.subr.mxu0 0.0
        %885 = vmatpush1.msra.mxu0 0.0
        %886 = vmatprep.subr.mxu0 0.0
        %887 = vmatpush1.msra.mxu0 0.0
        %888 = vmatprep.subr.mxu0 0.0
        %889 = vmatpush1.msra.mxu0 0.0
        %890 = vmatprep.mubr.f32.mxu0 0.0
        %891 = vmatmul.mubr.f32.gmra.mrb[0].mxu0 %v787
        %v892 = vpop.f32.mrb[0].mxu0
        %v893 = vadd.f32 %v824, %v892
        %v894 = vpop.f32.mrb[0].mxu0
        %895 = vmatprep.mubr.f32.mxu0 0.0
        %896 = vmatmul.mubr.f32.gmra.mrb[0].mxu0 %v788
        %v897 = vpop.f32.mrb[0].mxu0
        %v898 = vadd.f32 %v824, %v897
        %v899 = vpop.f32.mrb[0].mxu0
        %900 = vmatprep.mubr.f32.mxu0 0.0
        %901 = vmatmul.mubr.f32.gmra.mrb[0].mxu0 %v789
        %v902 = vpop.f32.mrb[0].mxu0
        %v903 = vadd.f32 %v824, %v902
        %v904 = vpop.f32.mrb[0].mxu0
        %905 = vmatprep.mubr.f32.mxu0 0.0
        %906 = vmatmul.mubr.f32.gmra.mrb[0].mxu0 %v790
        %v907 = vpop.f32.mrb[0].mxu0
        %v908 = vadd.f32 %v824, %v907
        %v909 = vpop.f32.mrb[0].mxu0
        %910 = vmatprep.mubr.f32.mxu0 0.0
        %911 = vmatmul.mubr.f32.gmra.mrb[0].mxu0 %v791
        %v912 = vpop.f32.mrb[0].mxu0
        %v913 = vadd.f32 %v824, %v912
        %v914 = vpop.f32.mrb[0].mxu0
        %915 = vmatprep.mubr.f32.mxu0 0.0
        %916 = vmatmul.mubr.f32.gmra.mrb[0].mxu0 %v792
        %v917 = vpop.f32.mrb[0].mxu0
        %v918 = vadd.f32 %v824, %v917
        %v919 = vpop.f32.mrb[0].mxu0
        %920 = vmatprep.mubr.f32.mxu0 0.0
        %921 = vmatmul.mubr.f32.gmra.mrb[0].mxu0 %v793
        %v922 = vpop.f32.mrb[0].mxu0
        %v923 = vadd.f32 %v824, %v922
        %v924 = vpop.f32.mrb[0].mxu0
        %925 = vmatprep.mubr.f32.mxu0 0.0
        %926 = vmatmul.mubr.f32.gmra.mrb[0].mxu0 %v794
        %v927 = vpop.f32.mrb[0].mxu0
        %v928 = vadd.f32 %v824, %v927
        %v929 = vpop.f32.mrb[0].mxu0
        %930 = vmatprep.mubr.f32.mxu0 0.0
        %931 = vmatmul.mubr.f32.gmra.mrb[0].mxu0 %v795
        %v932 = vpop.f32.mrb[0].mxu0
        %v933 = vadd.f32 %v824, %v932
        %v934 = vpop.f32.mrb[0].mxu0
        %935 = vmatprep.mubr.f32.mxu0 0.0
        %936 = vmatmul.mubr.f32.gmra.mrb[0].mxu0 %v796
        %v937 = vpop.f32.mrb[0].mxu0
        %v938 = vadd.f32 %v824, %v937
        %v939 = vpop.f32.mrb[0].mxu0
        %940 = vmatprep.mubr.f32.mxu0 0.0
        %941 = vmatmul.mubr.f32.gmra.mrb[0].mxu0 %v797
        %v942 = vpop.f32.mrb[0].mxu0
        %v943 = vadd.f32 %v824, %v942
        %v944 = vpop.f32.mrb[0].mxu0
        %945 = vmatprep.mubr.f32.mxu0 0.0
        %946 = vmatmul.mubr.f32.gmra.mrb[0].mxu0 %v798
        %v947 = vpop.f32.mrb[0].mxu0
        %v948 = vadd.f32 %v824, %v947
        %v949 = vpop.f32.mrb[0].mxu0
        %950 = vmatprep.mubr.f32.mxu0 0.0
        %951 = vmatmul.mubr.f32.gmra.mrb[0].mxu0 %v799
        %v952 = vpop.f32.mrb[0].mxu0
        %v953 = vadd.f32 %v824, %v952
        %v954 = vpop.f32.mrb[0].mxu0
        %955 = vmatprep.mubr.f32.mxu0 0.0
        %956 = vmatmul.mubr.f32.gmra.mrb[0].mxu0 %v800
        %v957 = vpop.f32.mrb[0].mxu0
        %v958 = vadd.f32 %v824, %v957
        %v959 = vpop.f32.mrb[0].mxu0
        %960 = vmatprep.mubr.f32.mxu0 0.0
        %961 = vmatmul.mubr.f32.gmra.mrb[0].mxu0 %v801
        %v962 = vpop.f32.mrb[0].mxu0
        %v963 = vadd.f32 %v824, %v962
        %v964 = vpop.f32.mrb[0].mxu0
        %965 = vmatprep.mubr.f32.mxu0 0.0
        %966 = vmatmul.mubr.f32.gmra.mrb[0].mxu0 %v802
        %v967 = vpop.f32.mrb[0].mxu0
        %v968 = vadd.f32 %v824, %v967
        %v969 = vpop.f32.mrb[0].mxu0
        %970 = vdwg.mxu0
        %v971 = vmax.f32 %v893, 0.0
        %v972 = vmax.f32 %v898, 0.0
        %v973 = vmax.f32 %v903, 0.0
        %v974 = vmax.f32 %v908, 0.0
        %v975 = vmax.f32 %v913, 0.0
        %v976 = vmax.f32 %v918, 0.0
        %v977 = vmax.f32 %v923, 0.0
        %v978 = vmax.f32 %v928, 0.0
        %v979 = vmax.f32 %v933, 0.0
        %v980 = vmax.f32 %v938, 0.0
        %v981 = vmax.f32 %v943, 0.0
        %v982 = vmax.f32 %v948, 0.0
        %v983 = vmax.f32 %v953, 0.0
        %v984 = vmax.f32 %v958, 0.0
        %v985 = vmax.f32 %v963, 0.0
        %v986 = vmax.f32 %v968, 0.0
        %v987 = vld [vmem:[#allocation12] sm:$0xff]
        %v988 = vld [vmem:[#allocation12 + $0x8] sm:$0xff]
        %v989 = vld [vmem:[#allocation12 + $0x10] sm:$0xff]
        %v990 = vld [vmem:[#allocation12 + $0x18] sm:$0xff]
        %v991 = vld [vmem:[#allocation12 + $0x20] sm:$0xff]
        %v992 = vld [vmem:[#allocation12 + $0x28] sm:$0xff]
        %v993 = vld [vmem:[#allocation12 + $0x30] sm:$0xff]
        %v994 = vld [vmem:[#allocation12 + $0x38] sm:$0xff]
        %v995 = vld [vmem:[#allocation12 + $0x40] sm:$0xff]
        %v996 = vld [vmem:[#allocation12 + $0x48] sm:$0xff]
        %v997 = vld [vmem:[#allocation12 + $0x50] sm:$0xff]
        %v998 = vld [vmem:[#allocation12 + $0x58] sm:$0xff]
        %v999 = vld [vmem:[#allocation12 + $0x60] sm:$0xff]
        %v1000 = vld [vmem:[#allocation12 + $0x68] sm:$0xff]
        %v1001 = vld [vmem:[#allocation12 + $0x70] sm:$0xff]
        %v1002 = vld [vmem:[#allocation12 + $0x78] sm:$0xff]
        %v1003 = vld [vmem:[%s7] sm:$0x1]
        %v1005 = vlaneseq
        %v1006 = vshrl.u32 %v1005, 7
        %v1007 = vsub.s32 0, %v1006
        %v1008 = vrot.slane %v1003, %v1007
        %1010 = vmatprep.subr.mxu0 0.0
        %1011 = vmatpush1.msra.mxu0 %v987
        %1012 = vmatprep.subr.mxu0 0.0
        %1013 = vmatpush1.msra.mxu0 %v988
        %1014 = vmatprep.subr.mxu0 0.0
        %1015 = vmatpush1.msra.mxu0 %v989
        %1016 = vmatprep.subr.mxu0 0.0
        %1017 = vmatpush1.msra.mxu0 %v990
        %1018 = vmatprep.subr.mxu0 0.0
        %1019 = vmatpush1.msra.mxu0 %v991
        %1020 = vmatprep.subr.mxu0 0.0
        %1021 = vmatpush1.msra.mxu0 %v992
        %1022 = vmatprep.subr.mxu0 0.0
        %1023 = vmatpush1.msra.mxu0 %v993
        %1024 = vmatprep.subr.mxu0 0.0
        %1025 = vmatpush1.msra.mxu0 %v994
        %1026 = vmatprep.subr.mxu0 0.0
        %1027 = vmatpush1.msra.mxu0 %v995
        %1028 = vmatprep.subr.mxu0 0.0
        %1029 = vmatpush1.msra.mxu0 %v996
        %1030 = vmatprep.subr.mxu0 0.0
        %1031 = vmatpush1.msra.mxu0 %v997
        %1032 = vmatprep.subr.mxu0 0.0
        %1033 = vmatpush1.msra.mxu0 %v998
        %1034 = vmatprep.subr.mxu0 0.0
        %1035 = vmatpush1.msra.mxu0 %v999
        %1036 = vmatprep.subr.mxu0 0.0
        %1037 = vmatpush1.msra.mxu0 %v1000
        %1038 = vmatprep.subr.mxu0 0.0
        %1039 = vmatpush1.msra.mxu0 %v1001
        %1040 = vmatprep.subr.mxu0 0.0
        %1041 = vmatpush1.msra.mxu0 %v1002
        %1042 = vmatprep.subr.mxu0 0.0
        %1043 = vmatpush1.msra.mxu0 0.0
        %1044 = vmatprep.subr.mxu0 0.0
        %1045 = vmatpush1.msra.mxu0 0.0
        %1046 = vmatprep.subr.mxu0 0.0
        %1047 = vmatpush1.msra.mxu0 0.0
        %1048 = vmatprep.subr.mxu0 0.0
        %1049 = vmatpush1.msra.mxu0 0.0
        %1050 = vmatprep.subr.mxu0 0.0
        %1051 = vmatpush1.msra.mxu0 0.0
        %1052 = vmatprep.subr.mxu0 0.0
        %1053 = vmatpush1.msra.mxu0 0.0
        %1054 = vmatprep.subr.mxu0 0.0
        %1055 = vmatpush1.msra.mxu0 0.0
        %1056 = vmatprep.subr.mxu0 0.0
        %1057 = vmatpush1.msra.mxu0 0.0
        %1058 = vmatprep.subr.mxu0 0.0
        %1059 = vmatpush1.msra.mxu0 0.0
        %1060 = vmatprep.subr.mxu0 0.0
        %1061 = vmatpush1.msra.mxu0 0.0
        %1062 = vmatprep.subr.mxu0 0.0
        %1063 = vmatpush1.msra.mxu0 0.0
        %1064 = vmatprep.subr.mxu0 0.0
        %1065 = vmatpush1.msra.mxu0 0.0
        %1066 = vmatprep.subr.mxu0 0.0
        %1067 = vmatpush1.msra.mxu0 0.0
        %1068 = vmatprep.subr.mxu0 0.0
        %1069 = vmatpush1.msra.mxu0 0.0
        %1070 = vmatprep.subr.mxu0 0.0
        %1071 = vmatpush1.msra.mxu0 0.0
        %1072 = vmatprep.subr.mxu0 0.0
        %1073 = vmatpush1.msra.mxu0 0.0
        %1074 = vmatprep.mubr.f32.mxu0 0.0
        %1075 = vmatmul.mubr.f32.gmra.mrb[0].mxu0 %v971
        %v1076 = vpop.f32.mrb[0].mxu0
        %v1077 = vadd.f32 %v1008, %v1076
        %v1078 = vpop.f32.mrb[0].mxu0
        %1079 = vmatprep.mubr.f32.mxu0 0.0
        %1080 = vmatmul.mubr.f32.gmra.mrb[0].mxu0 %v972
        %v1081 = vpop.f32.mrb[0].mxu0
        %v1082 = vadd.f32 %v1008, %v1081
        %v1083 = vpop.f32.mrb[0].mxu0
        %1084 = vmatprep.mubr.f32.mxu0 0.0
        %1085 = vmatmul.mubr.f32.gmra.mrb[0].mxu0 %v973
        %v1086 = vpop.f32.mrb[0].mxu0
        %v1087 = vadd.f32 %v1008, %v1086
        %v1088 = vpop.f32.mrb[0].mxu0
        %1089 = vmatprep.mubr.f32.mxu0 0.0
        %1090 = vmatmul.mubr.f32.gmra.mrb[0].mxu0 %v974
        %v1091 = vpop.f32.mrb[0].mxu0
        %v1092 = vadd.f32 %v1008, %v1091
        %v1093 = vpop.f32.mrb[0].mxu0
        %1094 = vmatprep.mubr.f32.mxu0 0.0
        %1095 = vmatmul.mubr.f32.gmra.mrb[0].mxu0 %v975
        %v1096 = vpop.f32.mrb[0].mxu0
        %v1097 = vadd.f32 %v1008, %v1096
        %v1098 = vpop.f32.mrb[0].mxu0
        %1099 = vmatprep.mubr.f32.mxu0 0.0
        %1100 = vmatmul.mubr.f32.gmra.mrb[0].mxu0 %v976
        %v1101 = vpop.f32.mrb[0].mxu0
        %v1102 = vadd.f32 %v1008, %v1101
        %v1103 = vpop.f32.mrb[0].mxu0
        %1104 = vmatprep.mubr.f32.mxu0 0.0
        %1105 = vmatmul.mubr.f32.gmra.mrb[0].mxu0 %v977
        %v1106 = vpop.f32.mrb[0].mxu0
        %v1107 = vadd.f32 %v1008, %v1106
        %v1108 = vpop.f32.mrb[0].mxu0
        %1109 = vmatprep.mubr.f32.mxu0 0.0
        %1110 = vmatmul.mubr.f32.gmra.mrb[0].mxu0 %v978
        %v1111 = vpop.f32.mrb[0].mxu0
        %v1112 = vadd.f32 %v1008, %v1111
        %v1113 = vpop.f32.mrb[0].mxu0
        %1114 = vmatprep.mubr.f32.mxu0 0.0
        %1115 = vmatmul.mubr.f32.gmra.mrb[0].mxu0 %v979
        %v1116 = vpop.f32.mrb[0].mxu0
        %v1117 = vadd.f32 %v1008, %v1116
        %v1118 = vpop.f32.mrb[0].mxu0
        %1119 = vmatprep.mubr.f32.mxu0 0.0
        %1120 = vmatmul.mubr.f32.gmra.mrb[0].mxu0 %v980
        %v1121 = vpop.f32.mrb[0].mxu0
        %v1122 = vadd.f32 %v1008, %v1121
        %v1123 = vpop.f32.mrb[0].mxu0
        %1124 = vmatprep.mubr.f32.mxu0 0.0
        %1125 = vmatmul.mubr.f32.gmra.mrb[0].mxu0 %v981
        %v1126 = vpop.f32.mrb[0].mxu0
        %v1127 = vadd.f32 %v1008, %v1126
        %v1128 = vpop.f32.mrb[0].mxu0
        %1129 = vmatprep.mubr.f32.mxu0 0.0
        %1130 = vmatmul.mubr.f32.gmra.mrb[0].mxu0 %v982
        %v1131 = vpop.f32.mrb[0].mxu0
        %v1132 = vadd.f32 %v1008, %v1131
        %v1133 = vpop.f32.mrb[0].mxu0
        %1134 = vmatprep.mubr.f32.mxu0 0.0
        %1135 = vmatmul.mubr.f32.gmra.mrb[0].mxu0 %v983
        %v1136 = vpop.f32.mrb[0].mxu0
        %v1137 = vadd.f32 %v1008, %v1136
        %v1138 = vpop.f32.mrb[0].mxu0
        %1139 = vmatprep.mubr.f32.mxu0 0.0
        %1140 = vmatmul.mubr.f32.gmra.mrb[0].mxu0 %v984
        %v1141 = vpop.f32.mrb[0].mxu0
        %v1142 = vadd.f32 %v1008, %v1141
        %v1143 = vpop.f32.mrb[0].mxu0
        %1144 = vmatprep.mubr.f32.mxu0 0.0
        %1145 = vmatmul.mubr.f32.gmra.mrb[0].mxu0 %v985
        %v1146 = vpop.f32.mrb[0].mxu0
        %v1147 = vadd.f32 %v1008, %v1146
        %v1148 = vpop.f32.mrb[0].mxu0
        %1149 = vmatprep.mubr.f32.mxu0 0.0
        %1150 = vmatmul.mubr.f32.gmra.mrb[0].mxu0 %v986
        %v1151 = vpop.f32.mrb[0].mxu0
        %v1152 = vadd.f32 %v1008, %v1151
        %v1153 = vpop.f32.mrb[0].mxu0
        %1154 = vdwg.mxu0
        %v1155 = vxor.u32 %v1077, 2147483648
        %v1156 = vxor.u32 %v1082, 2147483648
        %v1157 = vxor.u32 %v1087, 2147483648
        %v1158 = vxor.u32 %v1092, 2147483648
        %v1159 = vxor.u32 %v1097, 2147483648
        %v1160 = vxor.u32 %v1102, 2147483648
        %v1161 = vxor.u32 %v1107, 2147483648
        %v1162 = vxor.u32 %v1112, 2147483648
        %v1163 = vxor.u32 %v1117, 2147483648
        %v1164 = vxor.u32 %v1122, 2147483648
        %v1165 = vxor.u32 %v1127, 2147483648
        %v1166 = vxor.u32 %v1132, 2147483648
        %v1167 = vxor.u32 %v1137, 2147483648
        %v1168 = vxor.u32 %v1142, 2147483648
        %v1169 = vxor.u32 %v1147, 2147483648
        %v1170 = vxor.u32 %v1152, 2147483648
        %v1171 = vmul.f32 %v1155, 1.442695
        %v1172 = vpow.pop %v1171
        %v1173 = vmul.f32 %v1156, 1.442695
        %v1174 = vpow.pop %v1173
        %v1175 = vmul.f32 %v1157, 1.442695
        %v1176 = vpow.pop %v1175
        %v1177 = vmul.f32 %v1158, 1.442695
        %v1178 = vpow.pop %v1177
        %v1179 = vmul.f32 %v1159, 1.442695
        %v1180 = vpow.pop %v1179
        %v1181 = vmul.f32 %v1160, 1.442695
        %v1182 = vpow.pop %v1181
        %v1183 = vmul.f32 %v1161, 1.442695
        %v1184 = vpow.pop %v1183
        %v1185 = vmul.f32 %v1162, 1.442695
        %v1186 = vpow.pop %v1185
        %v1187 = vmul.f32 %v1163, 1.442695
        %v1188 = vpow.pop %v1187
        %v1189 = vmul.f32 %v1164, 1.442695
        %v1190 = vpow.pop %v1189
        %v1191 = vmul.f32 %v1165, 1.442695
        %v1192 = vpow.pop %v1191
        %v1193 = vmul.f32 %v1166, 1.442695
        %v1194 = vpow.pop %v1193
        %v1195 = vmul.f32 %v1167, 1.442695
        %v1196 = vpow.pop %v1195
        %v1197 = vmul.f32 %v1168, 1.442695
        %v1198 = vpow.pop %v1197
        %v1199 = vmul.f32 %v1169, 1.442695
        %v1200 = vpow.pop %v1199
        %v1201 = vmul.f32 %v1170, 1.442695
        %v1202 = vpow.pop %v1201
        %v1203 = vadd.f32 %v1172, 1.0
        %v1204 = vadd.f32 %v1174, 1.0
        %v1205 = vadd.f32 %v1176, 1.0
        %v1206 = vadd.f32 %v1178, 1.0
        %v1207 = vadd.f32 %v1180, 1.0
        %v1208 = vadd.f32 %v1182, 1.0
        %v1209 = vadd.f32 %v1184, 1.0
        %v1210 = vadd.f32 %v1186, 1.0
        %v1211 = vadd.f32 %v1188, 1.0
        %v1212 = vadd.f32 %v1190, 1.0
        %v1213 = vadd.f32 %v1192, 1.0
        %v1214 = vadd.f32 %v1194, 1.0
        %v1215 = vadd.f32 %v1196, 1.0
        %v1216 = vadd.f32 %v1198, 1.0
        %v1217 = vadd.f32 %v1200, 1.0
        %v1218 = vadd.f32 %v1202, 1.0
        %v1219 = vrcp.pop %v1203
        %v1220 = vmul.f32 1.0, %v1219
        %v1221 = vrcp.pop %v1204
        %v1222 = vmul.f32 1.0, %v1221
        %v1223 = vrcp.pop %v1205
        %v1224 = vmul.f32 1.0, %v1223
        %v1225 = vrcp.pop %v1206
        %v1226 = vmul.f32 1.0, %v1225
        %v1227 = vrcp.pop %v1207
        %v1228 = vmul.f32 1.0, %v1227
        %v1229 = vrcp.pop %v1208
        %v1230 = vmul.f32 1.0, %v1229
        %v1231 = vrcp.pop %v1209
        %v1232 = vmul.f32 1.0, %v1231
        %v1233 = vrcp.pop %v1210
        %v1234 = vmul.f32 1.0, %v1233
        %v1235 = vrcp.pop %v1211
        %v1236 = vmul.f32 1.0, %v1235
        %v1237 = vrcp.pop %v1212
        %v1238 = vmul.f32 1.0, %v1237
        %v1239 = vrcp.pop %v1213
        %v1240 = vmul.f32 1.0, %v1239
        %v1241 = vrcp.pop %v1214
        %v1242 = vmul.f32 1.0, %v1241
        %v1243 = vrcp.pop %v1215
        %v1244 = vmul.f32 1.0, %v1243
        %v1245 = vrcp.pop %v1216
        %v1246 = vmul.f32 1.0, %v1245
        %v1247 = vrcp.pop %v1217
        %v1248 = vmul.f32 1.0, %v1247
        %v1249 = vrcp.pop %v1218
        %v1250 = vmul.f32 1.0, %v1249
        %v1251 = vmul.f32 %v1220, %v971
        %v1252 = vmul.f32 %v1222, %v972
        %v1253 = vmul.f32 %v1224, %v973
        %v1254 = vmul.f32 %v1226, %v974
        %v1255 = vmul.f32 %v1228, %v975
        %v1256 = vmul.f32 %v1230, %v976
        %v1257 = vmul.f32 %v1232, %v977
        %v1258 = vmul.f32 %v1234, %v978
        %v1259 = vmul.f32 %v1236, %v979
        %v1260 = vmul.f32 %v1238, %v980
        %v1261 = vmul.f32 %v1240, %v981
        %v1262 = vmul.f32 %v1242, %v982
        %v1263 = vmul.f32 %v1244, %v983
        %v1264 = vmul.f32 %v1246, %v984
        %v1265 = vmul.f32 %v1248, %v985
        %v1266 = vmul.f32 %v1250, %v986
        %v1267 = vlaneseq
        %v1268 = vshrl.u32 %v1267, 7
        %v1269 = vld [vmem:[%s518] sm:$0x1]
        %v1270 = vlaneseq
        %v1271 = vshrl.u32 %v1270, 7
        %v1272 = vsub.s32 0, %v1271
        %v1273 = vrot.slane %v1269, %v1272
        %vm1274 = vcmp.eq.s32.totalorder %v1268, %v1273
        %v1275 = vsel %vm1274, 1, 0
        %v1276 = vcvt.s32.f32 %v1275
        %v1277 = vld [vmem:[#allocation3] sm:$0xff]
        %1278 = vadd.xlane.f32.xlu0 %v1276
        %v1279 = vpop.xlane.xlu0 %1278
        %v1280 = vadd.f32 %v1277, %v1279
        %vm1281 = vcmask 7168
        %1282 = vst.msk [vmem:[#allocation3] sm:$0xff] %vm1281, %v1280
        %v1283 = vld [vmem:[#allocation2] sm:$0xff]
        %1284 = vmatprep.subr.mxu0 0.0
        %1285 = vmatpush1.msra.mxu0 %v1251
        %1286 = vmatprep.subr.mxu0 0.0
        %1287 = vmatpush1.msra.mxu0 %v1252
        %1288 = vmatprep.subr.mxu0 0.0
        %1289 = vmatpush1.msra.mxu0 %v1253
        %1290 = vmatprep.subr.mxu0 0.0
        %1291 = vmatpush1.msra.mxu0 %v1254
        %1292 = vmatprep.subr.mxu0 0.0
        %1293 = vmatpush1.msra.mxu0 %v1255
        %1294 = vmatprep.subr.mxu0 0.0
        %1295 = vmatpush1.msra.mxu0 %v1256
        %1296 = vmatprep.subr.mxu0 0.0
        %1297 = vmatpush1.msra.mxu0 %v1257
        %1298 = vmatprep.subr.mxu0 0.0
        %1299 = vmatpush1.msra.mxu0 %v1258
        %1300 = vmatprep.subr.mxu0 0.0
        %1301 = vmatpush1.msra.mxu0 %v1259
        %1302 = vmatprep.subr.mxu0 0.0
        %1303 = vmatpush1.msra.mxu0 %v1260
        %1304 = vmatprep.subr.mxu0 0.0
        %1305 = vmatpush1.msra.mxu0 %v1261
        %1306 = vmatprep.subr.mxu0 0.0
        %1307 = vmatpush1.msra.mxu0 %v1262
        %1308 = vmatprep.subr.mxu0 0.0
        %1309 = vmatpush1.msra.mxu0 %v1263
        %1310 = vmatprep.subr.mxu0 0.0
        %1311 = vmatpush1.msra.mxu0 %v1264
        %1312 = vmatprep.subr.mxu0 0.0
        %1313 = vmatpush1.msra.mxu0 %v1265
        %1314 = vmatprep.subr.mxu0 0.0
        %1315 = vmatpush1.msra.mxu0 %v1266
        %1316 = vmatprep.subr.mxu0 0.0
        %1317 = vmatpush1.msra.mxu0 0.0
        %1318 = vmatprep.subr.mxu0 0.0
        %1319 = vmatpush1.msra.mxu0 0.0
        %1320 = vmatprep.subr.mxu0 0.0
        %1321 = vmatpush1.msra.mxu0 0.0
        %1322 = vmatprep.subr.mxu0 0.0
        %1323 = vmatpush1.msra.mxu0 0.0
        %1324 = vmatprep.subr.mxu0 0.0
        %1325 = vmatpush1.msra.mxu0 0.0
        %1326 = vmatprep.subr.mxu0 0.0
        %1327 = vmatpush1.msra.mxu0 0.0
        %1328 = vmatprep.subr.mxu0 0.0
        %1329 = vmatpush1.msra.mxu0 0.0
        %1330 = vmatprep.subr.mxu0 0.0
        %1331 = vmatpush1.msra.mxu0 0.0
        %1332 = vmatprep.subr.mxu0 0.0
        %1333 = vmatpush1.msra.mxu0 0.0
        %1334 = vmatprep.subr.mxu0 0.0
        %1335 = vmatpush1.msra.mxu0 0.0
        %1336 = vmatprep.subr.mxu0 0.0
        %1337 = vmatpush1.msra.mxu0 0.0
        %1338 = vmatprep.subr.mxu0 0.0
        %1339 = vmatpush1.msra.mxu0 0.0
        %1340 = vmatprep.subr.mxu0 0.0
        %1341 = vmatpush1.msra.mxu0 0.0
        %1342 = vmatprep.subr.mxu0 0.0
        %1343 = vmatpush1.msra.mxu0 0.0
        %1344 = vmatprep.subr.mxu0 0.0
        %1345 = vmatpush1.msra.mxu0 0.0
        %1346 = vmatprep.subr.mxu0 0.0
        %1347 = vmatpush1.msra.mxu0 0.0
        %1348 = vmatprep.mubr.f32.mxu0 0.0
        %1349 = vmatmul.mubr.f32.gmra.mrb[0].mxu0 %v1276
        %v1350 = vpop.f32.mrb[0].mxu0
        %v1351 = vadd.f32 0.0, %v1350
        %v1352 = vpop.f32.mrb[0].mxu0
        %1353 = vdwg.mxu0
        %v1354 = vadd.f32 %v1283, %v1351
        %1355 = vst [vmem:[#allocation2] sm:$0xff] %v1354
        %p1356 = scmp.eq.s32.totalorder %s35, 2
        // Predicated region
        $region113: #{tpu_custom_call.1} parent=75 // pred_check
          %p1357 = pneg %p1356
        $region114: #{tpu_custom_call.1} parent=75 // pred_check_branch
          %1359 = sbr.rel (%p1357) target = $region116
        $region115: #{tpu_custom_call.1} parent=75 // pred_region
          %v1360 = vld [vmem:[#allocation2] sm:$0xff]
          %v1361 = vld [vmem:[#allocation3] sm:$0xff]
          %v1362 = vmax.f32 %v1361, 1.0
          %1364 = vset.pattern.permute.xlu0 0
          %1365 = vperm.xlu0 %1364, %v1362
          %v1366 = vpop.permute.xlu0 %1365
          %v1368 = vrcp.pop %v1366
          %v1369 = vmul.f32 %v1360, %v1368
          %v1370 = vld [vmem:[#allocation13] sm:$0xff]
          %v1371 = vld [vmem:[#allocation13 + $0x8] sm:$0xff]
          %v1372 = vld [vmem:[#allocation13 + $0x10] sm:$0xff]
          %v1373 = vld [vmem:[#allocation13 + $0x18] sm:$0xff]
          %v1374 = vld [vmem:[#allocation13 + $0x20] sm:$0xff]
          %v1375 = vld [vmem:[#allocation13 + $0x28] sm:$0xff]
          %v1376 = vld [vmem:[#allocation13 + $0x30] sm:$0xff]
          %v1377 = vld [vmem:[#allocation13 + $0x38] sm:$0xff]
          %v1378 = vld [vmem:[#allocation13 + $0x40] sm:$0xff]
          %v1379 = vld [vmem:[#allocation13 + $0x48] sm:$0xff]
          %v1380 = vld [vmem:[#allocation13 + $0x50] sm:$0xff]
          %v1381 = vld [vmem:[#allocation13 + $0x58] sm:$0xff]
          %v1382 = vld [vmem:[#allocation13 + $0x60] sm:$0xff]
          %v1383 = vld [vmem:[#allocation13 + $0x68] sm:$0xff]
          %v1384 = vld [vmem:[#allocation13 + $0x70] sm:$0xff]
          %v1385 = vld [vmem:[#allocation13 + $0x78] sm:$0xff]
          %v1386 = vld [vmem:[%s9] sm:$0x1]
          %v1388 = vlaneseq
          %v1389 = vshrl.u32 %v1388, 7
          %v1390 = vsub.s32 0, %v1389
          %v1391 = vrot.slane %v1386, %v1390
          %1393 = vmatprep.subr.mxu0 0.0
          %1394 = vmatpush1.msra.mxu0 %v1370
          %1395 = vmatprep.subr.mxu0 0.0
          %1396 = vmatpush1.msra.mxu0 %v1371
          %1397 = vmatprep.subr.mxu0 0.0
          %1398 = vmatpush1.msra.mxu0 %v1372
          %1399 = vmatprep.subr.mxu0 0.0
          %1400 = vmatpush1.msra.mxu0 %v1373
          %1401 = vmatprep.subr.mxu0 0.0
          %1402 = vmatpush1.msra.mxu0 %v1374
          %1403 = vmatprep.subr.mxu0 0.0
          %1404 = vmatpush1.msra.mxu0 %v1375
          %1405 = vmatprep.subr.mxu0 0.0
          %1406 = vmatpush1.msra.mxu0 %v1376
          %1407 = vmatprep.subr.mxu0 0.0
          %1408 = vmatpush1.msra.mxu0 %v1377
          %1409 = vmatprep.subr.mxu0 0.0
          %1410 = vmatpush1.msra.mxu0 %v1378
          %1411 = vmatprep.subr.mxu0 0.0
          %1412 = vmatpush1.msra.mxu0 %v1379
          %1413 = vmatprep.subr.mxu0 0.0
          %1414 = vmatpush1.msra.mxu0 %v1380
          %1415 = vmatprep.subr.mxu0 0.0
          %1416 = vmatpush1.msra.mxu0 %v1381
          %1417 = vmatprep.subr.mxu0 0.0
          %1418 = vmatpush1.msra.mxu0 %v1382
          %1419 = vmatprep.subr.mxu0 0.0
          %1420 = vmatpush1.msra.mxu0 %v1383
          %1421 = vmatprep.subr.mxu0 0.0
          %1422 = vmatpush1.msra.mxu0 %v1384
          %1423 = vmatprep.subr.mxu0 0.0
          %1424 = vmatpush1.msra.mxu0 %v1385
          %1425 = vmatprep.subr.mxu0 0.0
          %1426 = vmatpush1.msra.mxu0 0.0
          %1427 = vmatprep.subr.mxu0 0.0
          %1428 = vmatpush1.msra.mxu0 0.0
          %1429 = vmatprep.subr.mxu0 0.0
          %1430 = vmatpush1.msra.mxu0 0.0
          %1431 = vmatprep.subr.mxu0 0.0
          %1432 = vmatpush1.msra.mxu0 0.0
          %1433 = vmatprep.subr.mxu0 0.0
          %1434 = vmatpush1.msra.mxu0 0.0
          %1435 = vmatprep.subr.mxu0 0.0
          %1436 = vmatpush1.msra.mxu0 0.0
          %1437 = vmatprep.subr.mxu0 0.0
          %1438 = vmatpush1.msra.mxu0 0.0
          %1439 = vmatprep.subr.mxu0 0.0
          %1440 = vmatpush1.msra.mxu0 0.0
          %1441 = vmatprep.subr.mxu0 0.0
          %1442 = vmatpush1.msra.mxu0 0.0
          %1443 = vmatprep.subr.mxu0 0.0
          %1444 = vmatpush1.msra.mxu0 0.0
          %1445 = vmatprep.subr.mxu0 0.0
          %1446 = vmatpush1.msra.mxu0 0.0
          %1447 = vmatprep.subr.mxu0 0.0
          %1448 = vmatpush1.msra.mxu0 0.0
          %1449 = vmatprep.subr.mxu0 0.0
          %1450 = vmatpush1.msra.mxu0 0.0
          %1451 = vmatprep.subr.mxu0 0.0
          %1452 = vmatpush1.msra.mxu0 0.0
          %1453 = vmatprep.subr.mxu0 0.0
          %1454 = vmatpush1.msra.mxu0 0.0
          %1455 = vmatprep.subr.mxu0 0.0
          %1456 = vmatpush1.msra.mxu0 0.0
          %1457 = vmatprep.mubr.f32.mxu0 0.0
          %1458 = vmatmul.mubr.f32.gmra.mrb[0].mxu0 %v1369
          %v1459 = vpop.f32.mrb[0].mxu0
          %v1460 = vadd.f32 %v1391, %v1459
          %v1461 = vpop.f32.mrb[0].mxu0
          %1462 = vdwg.mxu0
          %v1463 = vmax.f32 %v1460, 0.0
          %v1464 = vld [vmem:[#allocation15] sm:$0xff]
          %v1465 = vld [vmem:[#allocation15 + $0x8] sm:$0xff]
          %v1466 = vld [vmem:[#allocation15 + $0x10] sm:$0xff]
          %v1467 = vld [vmem:[#allocation15 + $0x18] sm:$0xff]
          %v1468 = vld [vmem:[#allocation15 + $0x20] sm:$0xff]
          %v1469 = vld [vmem:[#allocation15 + $0x28] sm:$0xff]
          %v1470 = vld [vmem:[#allocation15 + $0x30] sm:$0xff]
          %v1471 = vld [vmem:[#allocation15 + $0x38] sm:$0xff]
          %v1472 = vld [vmem:[#allocation15 + $0x40] sm:$0xff]
          %v1473 = vld [vmem:[#allocation15 + $0x48] sm:$0xff]
          %v1474 = vld [vmem:[#allocation15 + $0x50] sm:$0xff]
          %v1475 = vld [vmem:[#allocation15 + $0x58] sm:$0xff]
          %v1476 = vld [vmem:[#allocation15 + $0x60] sm:$0xff]
          %v1477 = vld [vmem:[#allocation15 + $0x68] sm:$0xff]
          %v1478 = vld [vmem:[#allocation15 + $0x70] sm:$0xff]
          %v1479 = vld [vmem:[#allocation15 + $0x78] sm:$0xff]
          %v1480 = vld [vmem:[%s11] sm:$0x1]
          %v1482 = vlaneseq
          %v1483 = vshrl.u32 %v1482, 7
          %v1484 = vsub.s32 0, %v1483
          %v1485 = vrot.slane %v1480, %v1484
          %1487 = vmatprep.subr.mxu0 0.0
          %1488 = vmatpush1.msra.mxu0 %v1464
          %1489 = vmatprep.subr.mxu0 0.0
          %1490 = vmatpush1.msra.mxu0 %v1465
          %1491 = vmatprep.subr.mxu0 0.0
          %1492 = vmatpush1.msra.mxu0 %v1466
          %1493 = vmatprep.subr.mxu0 0.0
          %1494 = vmatpush1.msra.mxu0 %v1467
          %1495 = vmatprep.subr.mxu0 0.0
          %1496 = vmatpush1.msra.mxu0 %v1468
          %1497 = vmatprep.subr.mxu0 0.0
          %1498 = vmatpush1.msra.mxu0 %v1469
          %1499 = vmatprep.subr.mxu0 0.0
          %1500 = vmatpush1.msra.mxu0 %v1470
          %1501 = vmatprep.subr.mxu0 0.0
          %1502 = vmatpush1.msra.mxu0 %v1471
          %1503 = vmatprep.subr.mxu0 0.0
          %1504 = vmatpush1.msra.mxu0 %v1472
          %1505 = vmatprep.subr.mxu0 0.0
          %1506 = vmatpush1.msra.mxu0 %v1473
          %1507 = vmatprep.subr.mxu0 0.0
          %1508 = vmatpush1.msra.mxu0 %v1474
          %1509 = vmatprep.subr.mxu0 0.0
          %1510 = vmatpush1.msra.mxu0 %v1475
          %1511 = vmatprep.subr.mxu0 0.0
          %1512 = vmatpush1.msra.mxu0 %v1476
          %1513 = vmatprep.subr.mxu0 0.0
          %1514 = vmatpush1.msra.mxu0 %v1477
          %1515 = vmatprep.subr.mxu0 0.0
          %1516 = vmatpush1.msra.mxu0 %v1478
          %1517 = vmatprep.subr.mxu0 0.0
          %1518 = vmatpush1.msra.mxu0 %v1479
          %1519 = vmatprep.subr.mxu0 0.0
          %1520 = vmatpush1.msra.mxu0 0.0
          %1521 = vmatprep.subr.mxu0 0.0
          %1522 = vmatpush1.msra.mxu0 0.0
          %1523 = vmatprep.subr.mxu0 0.0
          %1524 = vmatpush1.msra.mxu0 0.0
          %1525 = vmatprep.subr.mxu0 0.0
          %1526 = vmatpush1.msra.mxu0 0.0
          %1527 = vmatprep.subr.mxu0 0.0
          %1528 = vmatpush1.msra.mxu0 0.0
          %1529 = vmatprep.subr.mxu0 0.0
          %1530 = vmatpush1.msra.mxu0 0.0
          %1531 = vmatprep.subr.mxu0 0.0
          %1532 = vmatpush1.msra.mxu0 0.0
          %1533 = vmatprep.subr.mxu0 0.0
          %1534 = vmatpush1.msra.mxu0 0.0
          %1535 = vmatprep.subr.mxu0 0.0
          %1536 = vmatpush1.msra.mxu0 0.0
          %1537 = vmatprep.subr.mxu0 0.0
          %1538 = vmatpush1.msra.mxu0 0.0
          %1539 = vmatprep.subr.mxu0 0.0
          %1540 = vmatpush1.msra.mxu0 0.0
          %1541 = vmatprep.subr.mxu0 0.0
          %1542 = vmatpush1.msra.mxu0 0.0
          %1543 = vmatprep.subr.mxu0 0.0
          %1544 = vmatpush1.msra.mxu0 0.0
          %1545 = vmatprep.subr.mxu0 0.0
          %1546 = vmatpush1.msra.mxu0 0.0
          %1547 = vmatprep.subr.mxu0 0.0
          %1548 = vmatpush1.msra.mxu0 0.0
          %1549 = vmatprep.subr.mxu0 0.0
          %1550 = vmatpush1.msra.mxu0 0.0
          %1551 = vmatprep.mubr.f32.mxu0 0.0
          %1552 = vmatmul.mubr.f32.gmra.mrb[0].mxu0 %v1463
          %v1553 = vpop.f32.mrb[0].mxu0
          %v1554 = vadd.f32 %v1485, %v1553
          %v1555 = vpop.f32.mrb[0].mxu0
          %1556 = vdwg.mxu0
          %v1557 = vmax.f32 %v1554, 0.0
          %v1558 = vld [vmem:[#allocation16] sm:$0xff]
          %v1559 = vld [vmem:[#allocation16 + $0x8] sm:$0xff]
          %v1560 = vld [vmem:[#allocation16 + $0x10] sm:$0xff]
          %v1561 = vld [vmem:[#allocation16 + $0x18] sm:$0xff]
          %v1562 = vld [vmem:[#allocation16 + $0x20] sm:$0xff]
          %v1563 = vld [vmem:[#allocation16 + $0x28] sm:$0xff]
          %v1564 = vld [vmem:[#allocation16 + $0x30] sm:$0xff]
          %v1565 = vld [vmem:[#allocation16 + $0x38] sm:$0xff]
          %v1566 = vld [vmem:[#allocation16 + $0x40] sm:$0xff]
          %v1567 = vld [vmem:[#allocation16 + $0x48] sm:$0xff]
          %v1568 = vld [vmem:[#allocation16 + $0x50] sm:$0xff]
          %v1569 = vld [vmem:[#allocation16 + $0x58] sm:$0xff]
          %v1570 = vld [vmem:[#allocation16 + $0x60] sm:$0xff]
          %v1571 = vld [vmem:[#allocation16 + $0x68] sm:$0xff]
          %v1572 = vld [vmem:[#allocation16 + $0x70] sm:$0xff]
          %v1573 = vld [vmem:[#allocation16 + $0x78] sm:$0xff]
          %v1574 = vld [vmem:[%s13] sm:$0x1]
          %v1576 = vlaneseq
          %v1577 = vshrl.u32 %v1576, 7
          %v1578 = vsub.s32 0, %v1577
          %v1579 = vrot.slane %v1574, %v1578
          %1581 = vmatprep.subr.mxu0 0.0
          %1582 = vmatpush1.msra.mxu0 %v1558
          %1583 = vmatprep.subr.mxu0 0.0
          %1584 = vmatpush1.msra.mxu0 %v1559
          %1585 = vmatprep.subr.mxu0 0.0
          %1586 = vmatpush1.msra.mxu0 %v1560
          %1587 = vmatprep.subr.mxu0 0.0
          %1588 = vmatpush1.msra.mxu0 %v1561
          %1589 = vmatprep.subr.mxu0 0.0
          %1590 = vmatpush1.msra.mxu0 %v1562
          %1591 = vmatprep.subr.mxu0 0.0
          %1592 = vmatpush1.msra.mxu0 %v1563
          %1593 = vmatprep.subr.mxu0 0.0
          %1594 = vmatpush1.msra.mxu0 %v1564
          %1595 = vmatprep.subr.mxu0 0.0
          %1596 = vmatpush1.msra.mxu0 %v1565
          %1597 = vmatprep.subr.mxu0 0.0
          %1598 = vmatpush1.msra.mxu0 %v1566
          %1599 = vmatprep.subr.mxu0 0.0
          %1600 = vmatpush1.msra.mxu0 %v1567
          %1601 = vmatprep.subr.mxu0 0.0
          %1602 = vmatpush1.msra.mxu0 %v1568
          %1603 = vmatprep.subr.mxu0 0.0
          %1604 = vmatpush1.msra.mxu0 %v1569
          %1605 = vmatprep.subr.mxu0 0.0
          %1606 = vmatpush1.msra.mxu0 %v1570
          %1607 = vmatprep.subr.mxu0 0.0
          %1608 = vmatpush1.msra.mxu0 %v1571
          %1609 = vmatprep.subr.mxu0 0.0
          %1610 = vmatpush1.msra.mxu0 %v1572
          %1611 = vmatprep.subr.mxu0 0.0
          %1612 = vmatpush1.msra.mxu0 %v1573
          %1613 = vmatprep.subr.mxu0 0.0
          %1614 = vmatpush1.msra.mxu0 0.0
          %1615 = vmatprep.subr.mxu0 0.0
          %1616 = vmatpush1.msra.mxu0 0.0
          %1617 = vmatprep.subr.mxu0 0.0
          %1618 = vmatpush1.msra.mxu0 0.0
          %1619 = vmatprep.subr.mxu0 0.0
          %1620 = vmatpush1.msra.mxu0 0.0
          %1621 = vmatprep.subr.mxu0 0.0
          %1622 = vmatpush1.msra.mxu0 0.0
          %1623 = vmatprep.subr.mxu0 0.0
          %1624 = vmatpush1.msra.mxu0 0.0
          %1625 = vmatprep.subr.mxu0 0.0
          %1626 = vmatpush1.msra.mxu0 0.0
          %1627 = vmatprep.subr.mxu0 0.0
          %1628 = vmatpush1.msra.mxu0 0.0
          %1629 = vmatprep.subr.mxu0 0.0
          %1630 = vmatpush1.msra.mxu0 0.0
          %1631 = vmatprep.subr.mxu0 0.0
          %1632 = vmatpush1.msra.mxu0 0.0
          %1633 = vmatprep.subr.mxu0 0.0
          %1634 = vmatpush1.msra.mxu0 0.0
          %1635 = vmatprep.subr.mxu0 0.0
          %1636 = vmatpush1.msra.mxu0 0.0
          %1637 = vmatprep.subr.mxu0 0.0
          %1638 = vmatpush1.msra.mxu0 0.0
          %1639 = vmatprep.subr.mxu0 0.0
          %1640 = vmatpush1.msra.mxu0 0.0
          %1641 = vmatprep.subr.mxu0 0.0
          %1642 = vmatpush1.msra.mxu0 0.0
          %1643 = vmatprep.subr.mxu0 0.0
          %1644 = vmatpush1.msra.mxu0 0.0
          %1645 = vmatprep.mubr.f32.mxu0 0.0
          %1646 = vmatmul.mubr.f32.gmra.mrb[0].mxu0 %v1557
          %v1647 = vpop.f32.mrb[0].mxu0
          %v1648 = vadd.f32 %v1579, %v1647
          %v1649 = vpop.f32.mrb[0].mxu0
          %1650 = vdwg.mxu0
          %1651 = vst [vmem:[#allocation18] sm:$0xff] %v1648
        $region116: #{tpu_custom_call.1} parent=75 // pred_fallthru
          _
        // Predicated region
        $region117: #{tpu_custom_call.1} parent=75 // pred_check
          %p1652 = pneg %p352
        $region118: #{tpu_custom_call.1} parent=75 // pred_check_branch
          %1654 = sbr.rel (%p1652) target = $region120
        $region119: #{tpu_custom_call.1} parent=75 // pred_region
          %s1656 = ssub.s32 128, 128
          %1657 = vsyncadd [#allocation6], %s1656
          %s1659 = sshll.u32 [#allocation18], 4
          %s1660 = int_to_ptr.vmem [resolvable:$true] %s1659
          %1662 = dma.vmem_to_hbm [thread:$0]  %s1660, 128, %s14, [#allocation6]
        $region120: #{tpu_custom_call.1} parent=75 // pred_fallthru
          _
        // Predicated region
        $region121: #{tpu_custom_call.1} parent=75 // pred_check
          %p1663 = pneg %p352
        $region122: #{tpu_custom_call.1} parent=75 // pred_check_branch
          %1665 = sbr.rel (%p1663) target = $region124
        $region123: #{tpu_custom_call.1} parent=75 // pred_region
          %1666 = dma.done [#allocation6], 128
        $region124: #{tpu_custom_call.1} parent=75 // pred_fallthru
          _
      $region76: #{tpu_custom_call.1} parent=5 // pred_fallthru
        _
      %p1667 = scmp.le.s32.totalorder 2, %s30
      // Predicated region
      $region125: #{tpu_custom_call.1} parent=5 // pred_check
        %p1668 = pneg %p1667
      $region126: #{tpu_custom_call.1} parent=5 // pred_check_branch
        %1670 = sbr.rel (%p1668) target = $region128
      $region127: #{tpu_custom_call.1} parent=5 // pred_region
        %s1671 = ssub.s32 %s30, 2
      $region128: #{tpu_custom_call.1} parent=5 // pred_fallthru
        _
    $region6: #{tpu_custom_call.1} parent=1 // loop_footer
      %s34 = sadd.s32 1, %s30
    $region7: #{tpu_custom_call.1} parent=1 // loop_footer_branch
      %29 = sbr.rel target = $region3
    $region8: #{tpu_custom_call.1} parent=1 // loop_exit
      _
    %1672 = vsyncpa [#allocation5], 1
    %s1673 = scalar_lea.sflag [#allocation5], 1
    %1674 = vsyncpa %s1673, 1
    %1675 = vsyncpa [#allocation8], 1
    %s1676 = scalar_lea.sflag [#allocation8], 1
    %1677 = vsyncpa %s1676, 1
    %1678 = vsyncpa [#allocation11], 1
    %1679 = vsyncpa [#allocation14], 1
    %1680 = vsyncpa [#allocation17], 1
    %1681 = vsyncpa [#allocation6], 1
    %s1682 = scalar_lea.sflag [#allocation6], 1
    %1683 = vsyncpa %s1682, 1

</llo_original>
